<compile_context>
chip_gen: v5e
topology: v5e:2x2
jax: 0.10.0
libtpu: 0.0.40
codegen_flags: <defaults>
</compile_context>

<pallas_src>
import math

import jax
import jax.numpy as jnp
from jax.experimental import pallas as pl
from jax.experimental.pallas import tpu as pltpu


def _linear_t_kernel(x_ref, w_ref, b_ref, o_ref):
    # x_ref: (tm, H)   w_ref: (T, H)   b_ref: (T, 1)   o_ref: (T, tm)
    # out[t, m] = sum_h w[t, h] * x[m, h]   (lane-dense along m)
    acc = jax.lax.dot_general(
        w_ref[...],
        x_ref[...],
        dimension_numbers=(((1,), (1,)), ((), ())),  # contract H with H (rhs transposed)
        preferred_element_type=jnp.float32,
        precision=jax.lax.Precision.HIGHEST,
    )
    o_ref[...] = (acc + b_ref[...]).astype(o_ref.dtype)


_MIN_PALLAS_ROWS = 128  # below this, custom-call overhead dominates -> let XLA fuse


def _pick_block_m(M, H, T):
    """Largest lane-aligned M tile that keeps double-buffered tiles in VMEM."""
    budget = 12 * 1024 * 1024            # bytes for pipelined tiles (v7x-safe)
    per_row = 2 * 4 * (H + T)            # double-buffered f32 x row + out column
    tm = (budget // per_row) // 128 * 128
    tm = max(128, min(tm, 2048))
    m_pad = ((M + 127) // 128) * 128     # don't exceed (padded) M
    return min(tm, m_pad)


def time_log_model(x, weight, bias, *, block_m=None):
    """Pallas implementation of TimeLogModel.forward (nn.Linear(hidden, time_size)).

    Args:
      x:      [..., H] activations.
      weight: [T, H]   linear weight (PyTorch layout, NOT pre-transposed).
      bias:   [T]      linear bias.
    Returns:
      [..., T]
    """
    *lead, H = x.shape
    T, Hw = weight.shape
    assert Hw == H, (Hw, H)
    M = math.prod(lead) if lead else 1
    x2d = x.reshape(M, H)

    if M < _MIN_PALLAS_ROWS:
        # Tiny problem: a pallas_call costs more than the compute; plain XLA dot.
        out2d = (
            jnp.dot(
                x2d,
                weight.T,
                preferred_element_type=jnp.float32,
                precision=jax.lax.Precision.HIGHEST,
            )
            + bias.astype(jnp.float32)
        ).astype(x.dtype)
        return out2d.reshape(*lead, T)

    tm = block_m if block_m is not None else _pick_block_m(M, H, T)
    assert tm % 128 == 0, tm
    grid = (pl.cdiv(M, tm),)
    b2d = bias.reshape(T, 1).astype(jnp.float32)

    itemsize = jnp.dtype(x.dtype).itemsize
    cost = pl.CostEstimate(
        flops=2 * M * H * T,
        transcendentals=0,
        bytes_accessed=itemsize * (M * H + M * T) + 4 * (T * H + T),
    )

    out_t = pl.pallas_call(
        _linear_t_kernel,
        out_shape=jax.ShapeDtypeStruct((T, M), x.dtype),
        grid=grid,
        in_specs=[
            pl.BlockSpec((tm, H), lambda i: (i, 0)),   # x tile, pipelined over M
            pl.BlockSpec((T, H), lambda i: (0, 0)),    # weight, constant block
            pl.BlockSpec((T, 1), lambda i: (0, 0)),    # bias, constant block
        ],
        out_specs=pl.BlockSpec((T, tm), lambda i: (0, i)),  # lane-dense along M
        compiler_params=pltpu.CompilerParams(
            dimension_semantics=("parallel",),          # shard M tiles across v7x TCs
            vmem_limit_bytes=32 * 1024 * 1024,
        ),
        cost_estimate=cost,
    )(x2d, weight, b2d)

    # (T, M) -> (M, T); for T == 1 this is just a reshape (no data movement).
    out2d = out_t.T
    return out2d.reshape(*lead, T)


def reference(x, weight, bias):
    return (
        jnp.einsum("...h,th->...t", x, weight, precision=jax.lax.Precision.HIGHEST)
        + bias
    )


if __name__ == "__main__":
    key = jax.random.PRNGKey(0)
    kx, kw, kb, kx2 = jax.random.split(key, 4)

    tl_fn = jax.jit(time_log_model, static_argnames=("block_m",))

    # --- Pallas path: aligned, tiled shapes (M = 2048 rows, H = 128, T = 1) ---
    B, S, H, T = 2, 1024, 128, 1
    x = jax.random.normal(kx, (B, S, H), dtype=jnp.float32)
    weight = jax.random.normal(kw, (T, H), dtype=jnp.float32) * 0.02   # PyTorch [T, H]
    bias = jax.random.normal(kb, (T,), dtype=jnp.float32) * 0.02       # [T]

    out = jax.block_until_ready(tl_fn(x, weight, bias, block_m=512))   # grid = (4,)
    ref = reference(x, weight, bias)
    assert out.shape == (B, S, T), out.shape
    assert jnp.allclose(out, ref, atol=1e-4, rtol=1e-4), "Pallas path mismatch"

    # --- Tiny path (literal spec-sized config): falls back to fused XLA dot ---
    xs = jax.random.normal(kx2, (2, 8, 32), dtype=jnp.float32)
    ws = jax.random.normal(kw, (1, 32), dtype=jnp.float32) * 0.02
    bs = jax.random.normal(kb, (1,), dtype=jnp.float32) * 0.02
    outs = jax.block_until_ready(tl_fn(xs, ws, bs))
    refs = reference(xs, ws, bs)
    assert outs.shape == (2, 8, 1), outs.shape
    assert jnp.allclose(outs, refs, atol=1e-5, rtol=1e-5), "fallback mismatch"

    print("KERNEL_OK")
</pallas_src>

<mosaic_0001>
module attributes {stable_mosaic.version = 11 : i64} {
  func.func @_linear_t_kernel(%arg0: i32, %arg1: memref<512x128xf32, #tpu.memory_space<vmem>>, %arg2: memref<1x128xf32, #tpu.memory_space<vmem>>, %arg3: memref<1x1xf32, #tpu.memory_space<vmem>>, %arg4: memref<1x512xf32, #tpu.memory_space<vmem>>) attributes {dimension_semantics = [#tpu.dimension_semantics<parallel>], iteration_bounds = array<i64: 4>, scalar_prefetch = 0 : i64, scratch_operands = 0 : i64, tpu.core_type = #tpu.core_type<tc>, window_params = [{transform_indices = @transform_0, window_bounds = array<i64: 512, 128>}, {pipeline_mode = #tpu.pipeline_mode<synchronous>, transform_indices = @transform_1, window_bounds = array<i64: 1, 128>}, {pipeline_mode = #tpu.pipeline_mode<synchronous>, transform_indices = @transform_2, window_bounds = array<i64: 1, 1>}, {transform_indices = @transform_3, window_bounds = array<i64: 1, 512>}]} {
    %c0 = arith.constant 0 : index
    %c0_0 = arith.constant 0 : index
    %0 = vector.load %arg2[%c0, %c0_0] : memref<1x128xf32, #tpu.memory_space<vmem>>, vector<1x128xf32>
    %c0_1 = arith.constant 0 : index
    %c0_2 = arith.constant 0 : index
    %1 = vector.load %arg1[%c0_1, %c0_2] : memref<512x128xf32, #tpu.memory_space<vmem>>, vector<512x128xf32>
    %cst = arith.constant dense<0.000000e+00> : vector<1x512xf32>
    %2 = tpu.matmul %0, %1, %cst {dimension_numbers = #tpu.dot_dimension_numbers<[1], [1], [0], [0], [0, 0, 1, 0], [], []>, precision = #tpu.contract_precision<fp32>} : vector<1x128xf32>, vector<512x128xf32>, vector<1x512xf32> -> vector<1x512xf32>
    %c0_3 = arith.constant 0 : index
    %c0_4 = arith.constant 0 : index
    %3 = vector.load %arg3[%c0_3, %c0_4] : memref<1x1xf32, #tpu.memory_space<vmem>>, vector<1x1xf32>
    %4 = vector.broadcast %3 : vector<1x1xf32> to vector<1x512xf32>
    %5 = arith.addf %2, %4 : vector<1x512xf32>
    %c0_5 = arith.constant 0 : index
    %c0_6 = arith.constant 0 : index
    %6 = vector.load %arg4[%c0_5, %c0_6] : memref<1x512xf32, #tpu.memory_space<vmem>>, vector<1x512xf32>
    tpu.vector_store %arg4[%c0_5, %c0_6], %5 {strides = array<i32>} : memref<1x512xf32, #tpu.memory_space<vmem>>, vector<1x512xf32>,
    return
  }
  func.func @transform_0(%arg0: i32) -> (i32, i32) {
    %c0_i32 = arith.constant 0 : i32
    %c0_i32_0 = arith.constant 0 : i32
    return %arg0, %c0_i32 : i32, i32
  }
  func.func @transform_1(%arg0: i32) -> (i32, i32) {
    %c0_i32 = arith.constant 0 : i32
    %c0_i32_0 = arith.constant 0 : i32
    %c0_i32_1 = arith.constant 0 : i32
    return %c0_i32, %c0_i32_0 : i32, i32
  }
  func.func @transform_2(%arg0: i32) -> (i32, i32) {
    %c0_i32 = arith.constant 0 : i32
    %c0_i32_0 = arith.constant 0 : i32
    %c0_i32_1 = arith.constant 0 : i32
    return %c0_i32, %c0_i32_0 : i32, i32
  }
  func.func @transform_3(%arg0: i32) -> (i32, i32) {
    %c0_i32 = arith.constant 0 : i32
    %c0_i32_0 = arith.constant 0 : i32
    return %c0_i32, %arg0 : i32, i32
  }
}

</mosaic_0001>

<llo_original>
// kernel: time_log_model.1
$region0: #{time_log_model.1}
  #allocation0 [shape = 'u32[]', space=smem, size = 0x4, offset = 0x4, fixed_abs, tag = 'smem constant byte address 0x4 - core index']
  #allocation1 [shape = 'u32[72,128]{1,0:T(1,128)}', space=vmem, size = 0x9000, scoped, tag = 'internal scratch']
  #allocation2 [shape = 'f32[1,1]{1,0:T(1,128)S(1)}', space=vmem, size = 0x200, scoped, tag = 'scoped memory for time_log_model.1']
  %s0 = inlined_call_operand.hbm [shape: f32[2048,128], index: 0, kind: input, shape index: {}]
  %s1 = inlined_call_operand.vmem [shape: f32[1,128], index: 1, kind: input, shape index: {}]
  %s2 = inlined_call_operand.<no memory space> [shape: f32[1,1], index: 2, kind: input, shape index: {}]
  %s3 = inlined_call_operand.hbm [shape: f32[1,2048], index: 3, kind: output, shape index: {}]
  %s4 = sld [smem:[#allocation0]]
  $region49: #{time_log_model.1} parent=0
    _
  %s6 = ssub.s32 1, %s4
  %s7 = scalar_select 0, %s6, %s4
  %v8 = vstv %s2
  %9 = vst [vmem:[#allocation2] sm:$0x1] %v8
  $region1: #{time_log_model.1} parent=0
    #allocation3 [shape = 'u8[524288]{0}', space=vmem, size = 0x80000, scoped, tag = 'input window, operand 0']
    #allocation4 [shape = 's32[2]{0}', space=sflag, size = 0x8, scoped, tag = 'scoped memory for time_log_model.1']
    #allocation5 [shape = 's32[2]{0}', space=sflag, size = 0x8, scoped, tag = 'scoped memory for time_log_model.1']
    #allocation6 [shape = 'u8[4096]{0}', space=vmem, size = 0x1000, scoped, tag = 'output window, operand 0']
    %10 = vsyncpa [#allocation4], 0
    %s11 = scalar_lea.sflag [#allocation4], 1
    %12 = vsyncpa %s11, 0
    %13 = vsyncpa [#allocation5], 0
    %s14 = scalar_lea.sflag [#allocation5], 1
    %15 = vsyncpa %s14, 0
    loop: start=0, step=1, limit=6
    $region2: #{time_log_model.1} parent=1 // loop_pre_header
      _
    $region3: #{time_log_model.1} parent=1 // loop_header
      %s17 = sphi 0, %s21
      %p18 = scmp.ge.s32.totalorder %s17, 6
      %s27 = sphi 0, %s29
      %s30 = sphi 0, %s27
      %s31 = sphi 0, %s30
      %s47 = sphi 0, %s31
      %s51 = sphi 0, %s51
      %s53 = sphi 0, %s51
      %s54 = sphi 0, %s53
      %s68 = sphi 0, %s54
      %s72 = sphi 0, %s72
      %s74 = sphi 0, %s72
      %s75 = sphi 0, %s74
      %s89 = sphi 0, %s75
      %s95 = sphi 0, %s97
      %s98 = sphi 0, %s95
      %s99 = sphi 0, %s98
      %s115 = sphi 0, %s99
    $region4: #{time_log_model.1} parent=1 // loop_header_branch
      %20 = sbr.rel (%p18) target = $region8
    $region5: #{time_log_model.1} parent=1 // loop_body
      %s22 = ssub.s32 %s17, 1
      %s23 = ssub.s32 %s17, 2
      %s24 = sadd.s32 %s17, 1
      %s25 = ssub.s32 %s17, %s24
      %p26 = scmp.eq.s32.totalorder %s25, 0
      %s28 = sadd.s32 %s27, 1
      %s29 = scalar_select %p26, %s27, %s28
      %p32 = pneg %p26
      %p33 = scmp.eq.s32.totalorder %s17, 3
      %p34 = por %p32, %p33
      %p35 = scmp.ne.s32.totalorder %s27, %s30
      %p36 = scmp.eq.s32.totalorder %s17, 0
      %p37 = por %p35, %p36
      %p38 = scmp.ne.s32.totalorder %s27, %s30
      %p39 = scmp.eq.s32.totalorder %s22, 3
      %p40 = por %p38, %p39
      %p41 = scmp.ne.s32.totalorder %s30, %s31
      %p42 = scmp.eq.s32.totalorder %s22, 0
      %p43 = por %p41, %p42
      %p44 = scmp.ne.s32.totalorder %s30, %s31
      %p45 = scmp.eq.s32.totalorder %s23, 3
      %p46 = por %p44, %p45
      %p48 = scmp.ne.s32.totalorder %s31, %s47
      %p49 = scmp.eq.s32.totalorder %s23, 0
      %p50 = por %p48, %p49
      %s52 = sadd.s32 %s51, 1
      %p55 = scmp.eq.s32.totalorder %s17, 3
      %p56 = scmp.ne.s32.totalorder %s51, %s53
      %p57 = scmp.eq.s32.totalorder %s17, 0
      %p58 = por %p56, %p57
      %p59 = scmp.ne.s32.totalorder %s51, %s53
      %p60 = scmp.eq.s32.totalorder %s22, 3
      %p61 = por %p59, %p60
      %p62 = scmp.ne.s32.totalorder %s53, %s54
      %p63 = scmp.eq.s32.totalorder %s22, 0
      %p64 = por %p62, %p63
      %p65 = scmp.ne.s32.totalorder %s53, %s54
      %p66 = scmp.eq.s32.totalorder %s23, 3
      %p67 = por %p65, %p66
      %p69 = scmp.ne.s32.totalorder %s54, %s68
      %p70 = scmp.eq.s32.totalorder %s23, 0
      %p71 = por %p69, %p70
      %s73 = sadd.s32 %s72, 1
      %p76 = scmp.eq.s32.totalorder %s17, 3
      %p77 = scmp.ne.s32.totalorder %s72, %s74
      %p78 = scmp.eq.s32.totalorder %s17, 0
      %p79 = por %p77, %p78
      %p80 = scmp.ne.s32.totalorder %s72, %s74
      %p81 = scmp.eq.s32.totalorder %s22, 3
      %p82 = por %p80, %p81
      %p83 = scmp.ne.s32.totalorder %s74, %s75
      %p84 = scmp.eq.s32.totalorder %s22, 0
      %p85 = por %p83, %p84
      %p86 = scmp.ne.s32.totalorder %s74, %s75
      %p87 = scmp.eq.s32.totalorder %s23, 3
      %p88 = por %p86, %p87
      %p90 = scmp.ne.s32.totalorder %s75, %s89
      %p91 = scmp.eq.s32.totalorder %s23, 0
      %p92 = por %p90, %p91
      %s93 = ssub.s32 %s17, %s24
      %p94 = scmp.eq.s32.totalorder %s93, 0
      %s96 = sadd.s32 %s95, 1
      %s97 = scalar_select %p94, %s95, %s96
      %p100 = pneg %p94
      %p101 = scmp.eq.s32.totalorder %s17, 3
      %p102 = por %p100, %p101
      %p103 = scmp.ne.s32.totalorder %s95, %s98
      %p104 = scmp.eq.s32.totalorder %s17, 0
      %p105 = por %p103, %p104
      %p106 = scmp.ne.s32.totalorder %s95, %s98
      %p107 = scmp.eq.s32.totalorder %s22, 3
      %p108 = por %p106, %p107
      %p109 = scmp.ne.s32.totalorder %s98, %s99
      %p110 = scmp.eq.s32.totalorder %s22, 0
      %p111 = por %p109, %p110
      %p112 = scmp.ne.s32.totalorder %s98, %s99
      %p113 = scmp.eq.s32.totalorder %s23, 3
      %p114 = por %p112, %p113
      %p116 = scmp.ne.s32.totalorder %s99, %s115
      %p117 = scmp.eq.s32.totalorder %s23, 0
      %p118 = por %p116, %p117
      %p119 = scmp.le.s32.totalorder 1, %s17
      %p120 = scmp.lt.s32.totalorder %s17, 5
      %p121 = pnand %p119, %p120
      %p122 = pneg %p121
      // Predicated region
      $region9: #{time_log_model.1} parent=5 // pred_check
        _
      $region10: #{time_log_model.1} parent=5 // pred_check_branch
        %124 = sbr.rel (%p121) target = $region12
      $region11: #{time_log_model.1} parent=5 // pred_region
        %s125 = ssub.s32 %s17, 1
        // Predicated region
        $region13: #{time_log_model.1} parent=11 // pred_check
          %p126 = pneg %p64
        $region14: #{time_log_model.1} parent=11 // pred_check_branch
          %128 = sbr.rel (%p126) target = $region16
        $region15: #{time_log_model.1} parent=11 // pred_region
          _
        $region16: #{time_log_model.1} parent=11 // pred_fallthru
          _
        // Predicated region
        $region17: #{time_log_model.1} parent=11 // pred_check
          %p129 = pneg %p85
        $region18: #{time_log_model.1} parent=11 // pred_check_branch
          %131 = sbr.rel (%p129) target = $region20
        $region19: #{time_log_model.1} parent=11 // pred_region
          _
        $region20: #{time_log_model.1} parent=11 // pred_fallthru
          _
      $region12: #{time_log_model.1} parent=5 // pred_fallthru
        _
      %p132 = scmp.lt.s32.totalorder %s17, 4
      // Predicated region
      $region21: #{time_log_model.1} parent=5 // pred_check
        %p133 = pneg %p132
      $region22: #{time_log_model.1} parent=5 // pred_check_branch
        %135 = sbr.rel (%p133) target = $region24
      $region23: #{time_log_model.1} parent=5 // pred_region
        // Predicated region
        $region25: #{time_log_model.1} parent=23 // pred_check
          %p136 = pneg %p37
        $region26: #{time_log_model.1} parent=23 // pred_check_branch
          %138 = sbr.rel (%p136) target = $region28
        $region27: #{time_log_model.1} parent=23 // pred_region
          %s139 = sand.u32 %s27, 1
          %s140 = scalar_lea.sflag [#allocation4], %s139
          %s141 = sand.u32 %s27, 1
          %s142 = smul.addr %s141, 512
          %s143 = scalar_lea.vmem [#allocation3], %s142
          %s144 = smul.u32 64, %s17
          %146 = vsyncadd %s140, 0
          %s147 = smul.addr %s144, 8
          %s148 = scalar_lea.hbm %s0, %s147
          %s149 = sshll.u32 %s148, 4
          %s150 = int_to_ptr.hbm [resolvable:$true] %s149
          %s151 = sshll.u32 %s143, 4
          %s152 = int_to_ptr.vmem [resolvable:$true] %s151
          %157 = dma.hbm_to_vmem [thread:$0]  %s150, 8192, %s152, %s140, 128, 128, 8
        $region28: #{time_log_model.1} parent=23 // pred_fallthru
          _
      $region24: #{time_log_model.1} parent=5 // pred_fallthru
        _
      %p158 = scmp.le.s32.totalorder 1, %s17
      %p159 = scmp.lt.s32.totalorder %s17, 5
      %p160 = pnand %p158, %p159
      %p161 = pneg %p160
      // Predicated region
      $region29: #{time_log_model.1} parent=5 // pred_check
        _
      $region30: #{time_log_model.1} parent=5 // pred_check_branch
        %163 = sbr.rel (%p160) target = $region32
      $region31: #{time_log_model.1} parent=5 // pred_region
        %s164 = ssub.s32 %s17, 1
        %s165 = sand.u32 %s30, 1
        %s166 = scalar_lea.sflag [#allocation4], %s165
        %s167 = sand.u32 %s30, 1
        %s168 = smul.addr %s167, 512
        %s169 = scalar_lea.vmem [#allocation3], %s168
        // Predicated region
        $region33: #{time_log_model.1} parent=31 // pred_check
          %p170 = pneg %p43
        $region34: #{time_log_model.1} parent=31 // pred_check_branch
          %172 = sbr.rel (%p170) target = $region36
        $region35: #{time_log_model.1} parent=31 // pred_region
          %174 = dma.done %s166, 8192
        $region36: #{time_log_model.1} parent=31 // pred_fallthru
          _
        %s175 = sand.u32 %s30, 1
        %s176 = scalar_lea.sflag [#allocation4], %s175
        %s177 = sand.u32 %s30, 1
        %s178 = smul.addr %s177, 512
        %s179 = scalar_lea.vmem [#allocation3], %s178
        %p180 = pneg %p43
        %p181 = pneg %p40
        %p182 = pneg %p64
        %p183 = pneg %p61
        %p184 = pneg %p85
        %p185 = pneg %p82
        %p186 = pneg %p111
        %p187 = pneg %p108
        %s188 = sand.u32 %s98, 1
        %s189 = scalar_lea.sflag [#allocation5], %s188
        %s190 = sand.u32 %s98, 1
        %s191 = smul.addr %s190, 4
        %s192 = scalar_lea.vmem [#allocation6], %s191
        %s193 = smul.u32 64, %s22
        %s194 = smul.u32 4, %s22
        %v195 = vld [vmem:[%s1] sm:$0x1]
        %v196 = vld [vmem:[%s169] sm:$0xff]
        %v197 = vld [vmem:[%s169 + $0x8] sm:$0xff]
        %v198 = vld [vmem:[%s169 + $0x10] sm:$0xff]
        %v199 = vld [vmem:[%s169 + $0x18] sm:$0xff]
        %v200 = vld [vmem:[%s169 + $0x20] sm:$0xff]
        %v201 = vld [vmem:[%s169 + $0x28] sm:$0xff]
        %v202 = vld [vmem:[%s169 + $0x30] sm:$0xff]
        %v203 = vld [vmem:[%s169 + $0x38] sm:$0xff]
        %v204 = vld [vmem:[%s169 + $0x40] sm:$0xff]
        %v205 = vld [vmem:[%s169 + $0x48] sm:$0xff]
        %v206 = vld [vmem:[%s169 + $0x50] sm:$0xff]
        %v207 = vld [vmem:[%s169 + $0x58] sm:$0xff]
        %v208 = vld [vmem:[%s169 + $0x60] sm:$0xff]
        %v209 = vld [vmem:[%s169 + $0x68] sm:$0xff]
        %v210 = vld [vmem:[%s169 + $0x70] sm:$0xff]
        %v211 = vld [vmem:[%s169 + $0x78] sm:$0xff]
        %v212 = vld [vmem:[%s169 + $0x80] sm:$0xff]
        %v213 = vld [vmem:[%s169 + $0x88] sm:$0xff]
        %v214 = vld [vmem:[%s169 + $0x90] sm:$0xff]
        %v215 = vld [vmem:[%s169 + $0x98] sm:$0xff]
        %v216 = vld [vmem:[%s169 + $0xa0] sm:$0xff]
        %v217 = vld [vmem:[%s169 + $0xa8] sm:$0xff]
        %v218 = vld [vmem:[%s169 + $0xb0] sm:$0xff]
        %v219 = vld [vmem:[%s169 + $0xb8] sm:$0xff]
        %v220 = vld [vmem:[%s169 + $0xc0] sm:$0xff]
        %v221 = vld [vmem:[%s169 + $0xc8] sm:$0xff]
        %v222 = vld [vmem:[%s169 + $0xd0] sm:$0xff]
        %v223 = vld [vmem:[%s169 + $0xd8] sm:$0xff]
        %v224 = vld [vmem:[%s169 + $0xe0] sm:$0xff]
        %v225 = vld [vmem:[%s169 + $0xe8] sm:$0xff]
        %v226 = vld [vmem:[%s169 + $0xf0] sm:$0xff]
        %v227 = vld [vmem:[%s169 + $0xf8] sm:$0xff]
        %v228 = vld [vmem:[%s169 + $0x100] sm:$0xff]
        %v229 = vld [vmem:[%s169 + $0x108] sm:$0xff]
        %v230 = vld [vmem:[%s169 + $0x110] sm:$0xff]
        %v231 = vld [vmem:[%s169 + $0x118] sm:$0xff]
        %v232 = vld [vmem:[%s169 + $0x120] sm:$0xff]
        %v233 = vld [vmem:[%s169 + $0x128] sm:$0xff]
        %v234 = vld [vmem:[%s169 + $0x130] sm:$0xff]
        %v235 = vld [vmem:[%s169 + $0x138] sm:$0xff]
        %v236 = vld [vmem:[%s169 + $0x140] sm:$0xff]
        %v237 = vld [vmem:[%s169 + $0x148] sm:$0xff]
        %v238 = vld [vmem:[%s169 + $0x150] sm:$0xff]
        %v239 = vld [vmem:[%s169 + $0x158] sm:$0xff]
        %v240 = vld [vmem:[%s169 + $0x160] sm:$0xff]
        %v241 = vld [vmem:[%s169 + $0x168] sm:$0xff]
        %v242 = vld [vmem:[%s169 + $0x170] sm:$0xff]
        %v243 = vld [vmem:[%s169 + $0x178] sm:$0xff]
        %v244 = vld [vmem:[%s169 + $0x180] sm:$0xff]
        %v245 = vld [vmem:[%s169 + $0x188] sm:$0xff]
        %v246 = vld [vmem:[%s169 + $0x190] sm:$0xff]
        %v247 = vld [vmem:[%s169 + $0x198] sm:$0xff]
        %v248 = vld [vmem:[%s169 + $0x1a0] sm:$0xff]
        %v249 = vld [vmem:[%s169 + $0x1a8] sm:$0xff]
        %v250 = vld [vmem:[%s169 + $0x1b0] sm:$0xff]
        %v251 = vld [vmem:[%s169 + $0x1b8] sm:$0xff]
        %v252 = vld [vmem:[%s169 + $0x1c0] sm:$0xff]
        %v253 = vld [vmem:[%s169 + $0x1c8] sm:$0xff]
        %v254 = vld [vmem:[%s169 + $0x1d0] sm:$0xff]
        %v255 = vld [vmem:[%s169 + $0x1d8] sm:$0xff]
        %v256 = vld [vmem:[%s169 + $0x1e0] sm:$0xff]
        %v257 = vld [vmem:[%s169 + $0x1e8] sm:$0xff]
        %v258 = vld [vmem:[%s169 + $0x1f0] sm:$0xff]
        %v259 = vld [vmem:[%s169 + $0x1f8] sm:$0xff]
        %v260 = vld [vmem:[#allocation2] sm:$0x1]
        %262 = vset.pattern.permute.xlu0 0
        %263 = vperm.xlu0 %262, %v260
        %v264 = vpop.permute.xlu0 %263
        %v266 = vperm.slane %v264, 0
        %v267 = vand.u32 %v211, 4294901760
        %268 = vmatpush.xpose.msra.mxu0 %v267
        %v269 = vand.u32 %v210, 4294901760
        %270 = vmatpush.xpose.msra.mxu0 %v269
        %v271 = vand.u32 %v209, 4294901760
        %272 = vmatpush.xpose.msra.mxu0 %v271
        %v273 = vand.u32 %v208, 4294901760
        %274 = vmatpush.xpose.msra.mxu0 %v273
        %v275 = vand.u32 %v207, 4294901760
        %276 = vmatpush.xpose.msra.mxu0 %v275
        %v277 = vand.u32 %v206, 4294901760
        %278 = vmatpush.xpose.msra.mxu0 %v277
        %v279 = vand.u32 %v205, 4294901760
        %280 = vmatpush.xpose.msra.mxu0 %v279
        %v281 = vand.u32 %v204, 4294901760
        %282 = vmatpush.xpose.msra.mxu0 %v281
        %v283 = vand.u32 %v203, 4294901760
        %284 = vmatpush.xpose.msra.mxu0 %v283
        %v285 = vand.u32 %v202, 4294901760
        %286 = vmatpush.xpose.msra.mxu0 %v285
        %v287 = vand.u32 %v201, 4294901760
        %288 = vmatpush.xpose.msra.mxu0 %v287
        %v289 = vand.u32 %v200, 4294901760
        %290 = vmatpush.xpose.msra.mxu0 %v289
        %v291 = vand.u32 %v199, 4294901760
        %292 = vmatpush.xpose.msra.mxu0 %v291
        %v293 = vand.u32 %v198, 4294901760
        %294 = vmatpush.xpose.msra.mxu0 %v293
        %v295 = vand.u32 %v197, 4294901760
        %296 = vmatpush.xpose.msra.mxu0 %v295
        %v297 = vand.u32 %v196, 4294901760
        %298 = vmatpush.xpose.msra.mxu0 %v297
        %v299 = vand.u32 %v195, 4294901760
        %v300 = vsub.f32 %v195, %v299
        %v301 = vand.u32 %v300, 4294901760
        %v302 = vsub.f32 %v300, %v301
        %v303 = vand.u32 %v302, 4294901760
        %304 = vmatmul.f32.gmra.mxu0 %v303
        %v305 = vpop.f32.mrf.mxu0
        %v306 = vadd.f32 %v266, %v305
        %307 = vdwg.mxu0
        %v308 = vand.u32 %v211, 4294901760
        %v309 = vsub.f32 %v211, %v308
        %v310 = vand.u32 %v309, 4294901760
        %v311 = vsub.f32 %v309, %v310
        %v312 = vand.u32 %v311, 4294901760
        %313 = vmatpush.xpose.msra.mxu0 %v312
        %v314 = vand.u32 %v210, 4294901760
        %v315 = vsub.f32 %v210, %v314
        %v316 = vand.u32 %v315, 4294901760
        %v317 = vsub.f32 %v315, %v316
        %v318 = vand.u32 %v317, 4294901760
        %319 = vmatpush.xpose.msra.mxu0 %v318
        %v320 = vand.u32 %v209, 4294901760
        %v321 = vsub.f32 %v209, %v320
        %v322 = vand.u32 %v321, 4294901760
        %v323 = vsub.f32 %v321, %v322
        %v324 = vand.u32 %v323, 4294901760
        %325 = vmatpush.xpose.msra.mxu0 %v324
        %v326 = vand.u32 %v208, 4294901760
        %v327 = vsub.f32 %v208, %v326
        %v328 = vand.u32 %v327, 4294901760
        %v329 = vsub.f32 %v327, %v328
        %v330 = vand.u32 %v329, 4294901760
        %331 = vmatpush.xpose.msra.mxu0 %v330
        %v332 = vand.u32 %v207, 4294901760
        %v333 = vsub.f32 %v207, %v332
        %v334 = vand.u32 %v333, 4294901760
        %v335 = vsub.f32 %v333, %v334
        %v336 = vand.u32 %v335, 4294901760
        %337 = vmatpush.xpose.msra.mxu0 %v336
        %v338 = vand.u32 %v206, 4294901760
        %v339 = vsub.f32 %v206, %v338
        %v340 = vand.u32 %v339, 4294901760
        %v341 = vsub.f32 %v339, %v340
        %v342 = vand.u32 %v341, 4294901760
        %343 = vmatpush.xpose.msra.mxu0 %v342
        %v344 = vand.u32 %v205, 4294901760
        %v345 = vsub.f32 %v205, %v344
        %v346 = vand.u32 %v345, 4294901760
        %v347 = vsub.f32 %v345, %v346
        %v348 = vand.u32 %v347, 4294901760
        %349 = vmatpush.xpose.msra.mxu0 %v348
        %v350 = vand.u32 %v204, 4294901760
        %v351 = vsub.f32 %v204, %v350
        %v352 = vand.u32 %v351, 4294901760
        %v353 = vsub.f32 %v351, %v352
        %v354 = vand.u32 %v353, 4294901760
        %355 = vmatpush.xpose.msra.mxu0 %v354
        %v356 = vand.u32 %v203, 4294901760
        %v357 = vsub.f32 %v203, %v356
        %v358 = vand.u32 %v357, 4294901760
        %v359 = vsub.f32 %v357, %v358
        %v360 = vand.u32 %v359, 4294901760
        %361 = vmatpush.xpose.msra.mxu0 %v360
        %v362 = vand.u32 %v202, 4294901760
        %v363 = vsub.f32 %v202, %v362
        %v364 = vand.u32 %v363, 4294901760
        %v365 = vsub.f32 %v363, %v364
        %v366 = vand.u32 %v365, 4294901760
        %367 = vmatpush.xpose.msra.mxu0 %v366
        %v368 = vand.u32 %v201, 4294901760
        %v369 = vsub.f32 %v201, %v368
        %v370 = vand.u32 %v369, 4294901760
        %v371 = vsub.f32 %v369, %v370
        %v372 = vand.u32 %v371, 4294901760
        %373 = vmatpush.xpose.msra.mxu0 %v372
        %v374 = vand.u32 %v200, 4294901760
        %v375 = vsub.f32 %v200, %v374
        %v376 = vand.u32 %v375, 4294901760
        %v377 = vsub.f32 %v375, %v376
        %v378 = vand.u32 %v377, 4294901760
        %379 = vmatpush.xpose.msra.mxu0 %v378
        %v380 = vand.u32 %v199, 4294901760
        %v381 = vsub.f32 %v199, %v380
        %v382 = vand.u32 %v381, 4294901760
        %v383 = vsub.f32 %v381, %v382
        %v384 = vand.u32 %v383, 4294901760
        %385 = vmatpush.xpose.msra.mxu0 %v384
        %v386 = vand.u32 %v198, 4294901760
        %v387 = vsub.f32 %v198, %v386
        %v388 = vand.u32 %v387, 4294901760
        %v389 = vsub.f32 %v387, %v388
        %v390 = vand.u32 %v389, 4294901760
        %391 = vmatpush.xpose.msra.mxu0 %v390
        %v392 = vand.u32 %v197, 4294901760
        %v393 = vsub.f32 %v197, %v392
        %v394 = vand.u32 %v393, 4294901760
        %v395 = vsub.f32 %v393, %v394
        %v396 = vand.u32 %v395, 4294901760
        %397 = vmatpush.xpose.msra.mxu0 %v396
        %v398 = vand.u32 %v196, 4294901760
        %v399 = vsub.f32 %v196, %v398
        %v400 = vand.u32 %v399, 4294901760
        %v401 = vsub.f32 %v399, %v400
        %v402 = vand.u32 %v401, 4294901760
        %403 = vmatpush.xpose.msra.mxu0 %v402
        %v404 = vand.u32 %v195, 4294901760
        %405 = vmatmul.f32.gmra.mxu0 %v404
        %v406 = vpop.f32.mrf.mxu0
        %v407 = vadd.f32 %v306, %v406
        %408 = vdwg.mxu0
        %v409 = vand.u32 %v211, 4294901760
        %v410 = vsub.f32 %v211, %v409
        %411 = vmatpush.xpose.msra.mxu0 %v410
        %v412 = vand.u32 %v210, 4294901760
        %v413 = vsub.f32 %v210, %v412
        %414 = vmatpush.xpose.msra.mxu0 %v413
        %v415 = vand.u32 %v209, 4294901760
        %v416 = vsub.f32 %v209, %v415
        %417 = vmatpush.xpose.msra.mxu0 %v416
        %v418 = vand.u32 %v208, 4294901760
        %v419 = vsub.f32 %v208, %v418
        %420 = vmatpush.xpose.msra.mxu0 %v419
        %v421 = vand.u32 %v207, 4294901760
        %v422 = vsub.f32 %v207, %v421
        %423 = vmatpush.xpose.msra.mxu0 %v422
        %v424 = vand.u32 %v206, 4294901760
        %v425 = vsub.f32 %v206, %v424
        %426 = vmatpush.xpose.msra.mxu0 %v425
        %v427 = vand.u32 %v205, 4294901760
        %v428 = vsub.f32 %v205, %v427
        %429 = vmatpush.xpose.msra.mxu0 %v428
        %v430 = vand.u32 %v204, 4294901760
        %v431 = vsub.f32 %v204, %v430
        %432 = vmatpush.xpose.msra.mxu0 %v431
        %v433 = vand.u32 %v203, 4294901760
        %v434 = vsub.f32 %v203, %v433
        %435 = vmatpush.xpose.msra.mxu0 %v434
        %v436 = vand.u32 %v202, 4294901760
        %v437 = vsub.f32 %v202, %v436
        %438 = vmatpush.xpose.msra.mxu0 %v437
        %v439 = vand.u32 %v201, 4294901760
        %v440 = vsub.f32 %v201, %v439
        %441 = vmatpush.xpose.msra.mxu0 %v440
        %v442 = vand.u32 %v200, 4294901760
        %v443 = vsub.f32 %v200, %v442
        %444 = vmatpush.xpose.msra.mxu0 %v443
        %v445 = vand.u32 %v199, 4294901760
        %v446 = vsub.f32 %v199, %v445
        %447 = vmatpush.xpose.msra.mxu0 %v446
        %v448 = vand.u32 %v198, 4294901760
        %v449 = vsub.f32 %v198, %v448
        %450 = vmatpush.xpose.msra.mxu0 %v449
        %v451 = vand.u32 %v197, 4294901760
        %v452 = vsub.f32 %v197, %v451
        %453 = vmatpush.xpose.msra.mxu0 %v452
        %v454 = vand.u32 %v196, 4294901760
        %v455 = vsub.f32 %v196, %v454
        %456 = vmatpush.xpose.msra.mxu0 %v455
        %v457 = vand.u32 %v195, 4294901760
        %v458 = vsub.f32 %v195, %v457
        %459 = vmatmul.f32.gmra.mxu0 %v458
        %v460 = vpop.f32.mrf.mxu0
        %v461 = vadd.f32 %v407, %v460
        %462 = vdwg.mxu0
        %v463 = vand.u32 %v211, 4294901760
        %464 = vmatpush.xpose.msra.mxu0 %v463
        %v465 = vand.u32 %v210, 4294901760
        %466 = vmatpush.xpose.msra.mxu0 %v465
        %v467 = vand.u32 %v209, 4294901760
        %468 = vmatpush.xpose.msra.mxu0 %v467
        %v469 = vand.u32 %v208, 4294901760
        %470 = vmatpush.xpose.msra.mxu0 %v469
        %v471 = vand.u32 %v207, 4294901760
        %472 = vmatpush.xpose.msra.mxu0 %v471
        %v473 = vand.u32 %v206, 4294901760
        %474 = vmatpush.xpose.msra.mxu0 %v473
        %v475 = vand.u32 %v205, 4294901760
        %476 = vmatpush.xpose.msra.mxu0 %v475
        %v477 = vand.u32 %v204, 4294901760
        %478 = vmatpush.xpose.msra.mxu0 %v477
        %v479 = vand.u32 %v203, 4294901760
        %480 = vmatpush.xpose.msra.mxu0 %v479
        %v481 = vand.u32 %v202, 4294901760
        %482 = vmatpush.xpose.msra.mxu0 %v481
        %v483 = vand.u32 %v201, 4294901760
        %484 = vmatpush.xpose.msra.mxu0 %v483
        %v485 = vand.u32 %v200, 4294901760
        %486 = vmatpush.xpose.msra.mxu0 %v485
        %v487 = vand.u32 %v199, 4294901760
        %488 = vmatpush.xpose.msra.mxu0 %v487
        %v489 = vand.u32 %v198, 4294901760
        %490 = vmatpush.xpose.msra.mxu0 %v489
        %v491 = vand.u32 %v197, 4294901760
        %492 = vmatpush.xpose.msra.mxu0 %v491
        %v493 = vand.u32 %v196, 4294901760
        %494 = vmatpush.xpose.msra.mxu0 %v493
        %v495 = vand.u32 %v195, 4294901760
        %v496 = vsub.f32 %v195, %v495
        %v497 = vand.u32 %v496, 4294901760
        %498 = vmatmul.f32.gmra.mxu0 %v497
        %v499 = vpop.f32.mrf.mxu0
        %v500 = vadd.f32 %v461, %v499
        %501 = vdwg.mxu0
        %v502 = vand.u32 %v211, 4294901760
        %v503 = vsub.f32 %v211, %v502
        %v504 = vand.u32 %v503, 4294901760
        %505 = vmatpush.xpose.msra.mxu0 %v504
        %v506 = vand.u32 %v210, 4294901760
        %v507 = vsub.f32 %v210, %v506
        %v508 = vand.u32 %v507, 4294901760
        %509 = vmatpush.xpose.msra.mxu0 %v508
        %v510 = vand.u32 %v209, 4294901760
        %v511 = vsub.f32 %v209, %v510
        %v512 = vand.u32 %v511, 4294901760
        %513 = vmatpush.xpose.msra.mxu0 %v512
        %v514 = vand.u32 %v208, 4294901760
        %v515 = vsub.f32 %v208, %v514
        %v516 = vand.u32 %v515, 4294901760
        %517 = vmatpush.xpose.msra.mxu0 %v516
        %v518 = vand.u32 %v207, 4294901760
        %v519 = vsub.f32 %v207, %v518
        %v520 = vand.u32 %v519, 4294901760
        %521 = vmatpush.xpose.msra.mxu0 %v520
        %v522 = vand.u32 %v206, 4294901760
        %v523 = vsub.f32 %v206, %v522
        %v524 = vand.u32 %v523, 4294901760
        %525 = vmatpush.xpose.msra.mxu0 %v524
        %v526 = vand.u32 %v205, 4294901760
        %v527 = vsub.f32 %v205, %v526
        %v528 = vand.u32 %v527, 4294901760
        %529 = vmatpush.xpose.msra.mxu0 %v528
        %v530 = vand.u32 %v204, 4294901760
        %v531 = vsub.f32 %v204, %v530
        %v532 = vand.u32 %v531, 4294901760
        %533 = vmatpush.xpose.msra.mxu0 %v532
        %v534 = vand.u32 %v203, 4294901760
        %v535 = vsub.f32 %v203, %v534
        %v536 = vand.u32 %v535, 4294901760
        %537 = vmatpush.xpose.msra.mxu0 %v536
        %v538 = vand.u32 %v202, 4294901760
        %v539 = vsub.f32 %v202, %v538
        %v540 = vand.u32 %v539, 4294901760
        %541 = vmatpush.xpose.msra.mxu0 %v540
        %v542 = vand.u32 %v201, 4294901760
        %v543 = vsub.f32 %v201, %v542
        %v544 = vand.u32 %v543, 4294901760
        %545 = vmatpush.xpose.msra.mxu0 %v544
        %v546 = vand.u32 %v200, 4294901760
        %v547 = vsub.f32 %v200, %v546
        %v548 = vand.u32 %v547, 4294901760
        %549 = vmatpush.xpose.msra.mxu0 %v548
        %v550 = vand.u32 %v199, 4294901760
        %v551 = vsub.f32 %v199, %v550
        %v552 = vand.u32 %v551, 4294901760
        %553 = vmatpush.xpose.msra.mxu0 %v552
        %v554 = vand.u32 %v198, 4294901760
        %v555 = vsub.f32 %v198, %v554
        %v556 = vand.u32 %v555, 4294901760
        %557 = vmatpush.xpose.msra.mxu0 %v556
        %v558 = vand.u32 %v197, 4294901760
        %v559 = vsub.f32 %v197, %v558
        %v560 = vand.u32 %v559, 4294901760
        %561 = vmatpush.xpose.msra.mxu0 %v560
        %v562 = vand.u32 %v196, 4294901760
        %v563 = vsub.f32 %v196, %v562
        %v564 = vand.u32 %v563, 4294901760
        %565 = vmatpush.xpose.msra.mxu0 %v564
        %v566 = vand.u32 %v195, 4294901760
        %567 = vmatmul.f32.gmra.mxu0 %v566
        %v568 = vpop.f32.mrf.mxu0
        %v569 = vadd.f32 %v500, %v568
        %570 = vdwg.mxu0
        %v571 = vand.u32 %v211, 4294901760
        %572 = vmatpush.xpose.msra.mxu0 %v571
        %v573 = vand.u32 %v210, 4294901760
        %574 = vmatpush.xpose.msra.mxu0 %v573
        %v575 = vand.u32 %v209, 4294901760
        %576 = vmatpush.xpose.msra.mxu0 %v575
        %v577 = vand.u32 %v208, 4294901760
        %578 = vmatpush.xpose.msra.mxu0 %v577
        %v579 = vand.u32 %v207, 4294901760
        %580 = vmatpush.xpose.msra.mxu0 %v579
        %v581 = vand.u32 %v206, 4294901760
        %582 = vmatpush.xpose.msra.mxu0 %v581
        %v583 = vand.u32 %v205, 4294901760
        %584 = vmatpush.xpose.msra.mxu0 %v583
        %v585 = vand.u32 %v204, 4294901760
        %586 = vmatpush.xpose.msra.mxu0 %v585
        %v587 = vand.u32 %v203, 4294901760
        %588 = vmatpush.xpose.msra.mxu0 %v587
        %v589 = vand.u32 %v202, 4294901760
        %590 = vmatpush.xpose.msra.mxu0 %v589
        %v591 = vand.u32 %v201, 4294901760
        %592 = vmatpush.xpose.msra.mxu0 %v591
        %v593 = vand.u32 %v200, 4294901760
        %594 = vmatpush.xpose.msra.mxu0 %v593
        %v595 = vand.u32 %v199, 4294901760
        %596 = vmatpush.xpose.msra.mxu0 %v595
        %v597 = vand.u32 %v198, 4294901760
        %598 = vmatpush.xpose.msra.mxu0 %v597
        %v599 = vand.u32 %v197, 4294901760
        %600 = vmatpush.xpose.msra.mxu0 %v599
        %v601 = vand.u32 %v196, 4294901760
        %602 = vmatpush.xpose.msra.mxu0 %v601
        %v603 = vand.u32 %v195, 4294901760
        %604 = vmatmul.f32.gmra.mxu0 %v603
        %v605 = vpop.f32.mrf.mxu0
        %v606 = vadd.f32 %v569, %v605
        %607 = vdwg.mxu0
        %v608 = vand.u32 %v227, 4294901760
        %609 = vmatpush.xpose.msra.mxu0 %v608
        %v610 = vand.u32 %v226, 4294901760
        %611 = vmatpush.xpose.msra.mxu0 %v610
        %v612 = vand.u32 %v225, 4294901760
        %613 = vmatpush.xpose.msra.mxu0 %v612
        %v614 = vand.u32 %v224, 4294901760
        %615 = vmatpush.xpose.msra.mxu0 %v614
        %v616 = vand.u32 %v223, 4294901760
        %617 = vmatpush.xpose.msra.mxu0 %v616
        %v618 = vand.u32 %v222, 4294901760
        %619 = vmatpush.xpose.msra.mxu0 %v618
        %v620 = vand.u32 %v221, 4294901760
        %621 = vmatpush.xpose.msra.mxu0 %v620
        %v622 = vand.u32 %v220, 4294901760
        %623 = vmatpush.xpose.msra.mxu0 %v622
        %v624 = vand.u32 %v219, 4294901760
        %625 = vmatpush.xpose.msra.mxu0 %v624
        %v626 = vand.u32 %v218, 4294901760
        %627 = vmatpush.xpose.msra.mxu0 %v626
        %v628 = vand.u32 %v217, 4294901760
        %629 = vmatpush.xpose.msra.mxu0 %v628
        %v630 = vand.u32 %v216, 4294901760
        %631 = vmatpush.xpose.msra.mxu0 %v630
        %v632 = vand.u32 %v215, 4294901760
        %633 = vmatpush.xpose.msra.mxu0 %v632
        %v634 = vand.u32 %v214, 4294901760
        %635 = vmatpush.xpose.msra.mxu0 %v634
        %v636 = vand.u32 %v213, 4294901760
        %637 = vmatpush.xpose.msra.mxu0 %v636
        %v638 = vand.u32 %v212, 4294901760
        %639 = vmatpush.xpose.msra.mxu0 %v638
        %v640 = vand.u32 %v195, 4294901760
        %v641 = vsub.f32 %v195, %v640
        %v642 = vand.u32 %v641, 4294901760
        %v643 = vsub.f32 %v641, %v642
        %v644 = vand.u32 %v643, 4294901760
        %645 = vmatmul.f32.gmra.mxu0 %v644
        %v646 = vpop.f32.mrf.mxu0
        %v647 = vadd.f32 %v266, %v646
        %648 = vdwg.mxu0
        %v649 = vand.u32 %v227, 4294901760
        %v650 = vsub.f32 %v227, %v649
        %v651 = vand.u32 %v650, 4294901760
        %v652 = vsub.f32 %v650, %v651
        %v653 = vand.u32 %v652, 4294901760
        %654 = vmatpush.xpose.msra.mxu0 %v653
        %v655 = vand.u32 %v226, 4294901760
        %v656 = vsub.f32 %v226, %v655
        %v657 = vand.u32 %v656, 4294901760
        %v658 = vsub.f32 %v656, %v657
        %v659 = vand.u32 %v658, 4294901760
        %660 = vmatpush.xpose.msra.mxu0 %v659
        %v661 = vand.u32 %v225, 4294901760
        %v662 = vsub.f32 %v225, %v661
        %v663 = vand.u32 %v662, 4294901760
        %v664 = vsub.f32 %v662, %v663
        %v665 = vand.u32 %v664, 4294901760
        %666 = vmatpush.xpose.msra.mxu0 %v665
        %v667 = vand.u32 %v224, 4294901760
        %v668 = vsub.f32 %v224, %v667
        %v669 = vand.u32 %v668, 4294901760
        %v670 = vsub.f32 %v668, %v669
        %v671 = vand.u32 %v670, 4294901760
        %672 = vmatpush.xpose.msra.mxu0 %v671
        %v673 = vand.u32 %v223, 4294901760
        %v674 = vsub.f32 %v223, %v673
        %v675 = vand.u32 %v674, 4294901760
        %v676 = vsub.f32 %v674, %v675
        %v677 = vand.u32 %v676, 4294901760
        %678 = vmatpush.xpose.msra.mxu0 %v677
        %v679 = vand.u32 %v222, 4294901760
        %v680 = vsub.f32 %v222, %v679
        %v681 = vand.u32 %v680, 4294901760
        %v682 = vsub.f32 %v680, %v681
        %v683 = vand.u32 %v682, 4294901760
        %684 = vmatpush.xpose.msra.mxu0 %v683
        %v685 = vand.u32 %v221, 4294901760
        %v686 = vsub.f32 %v221, %v685
        %v687 = vand.u32 %v686, 4294901760
        %v688 = vsub.f32 %v686, %v687
        %v689 = vand.u32 %v688, 4294901760
        %690 = vmatpush.xpose.msra.mxu0 %v689
        %v691 = vand.u32 %v220, 4294901760
        %v692 = vsub.f32 %v220, %v691
        %v693 = vand.u32 %v692, 4294901760
        %v694 = vsub.f32 %v692, %v693
        %v695 = vand.u32 %v694, 4294901760
        %696 = vmatpush.xpose.msra.mxu0 %v695
        %v697 = vand.u32 %v219, 4294901760
        %v698 = vsub.f32 %v219, %v697
        %v699 = vand.u32 %v698, 4294901760
        %v700 = vsub.f32 %v698, %v699
        %v701 = vand.u32 %v700, 4294901760
        %702 = vmatpush.xpose.msra.mxu0 %v701
        %v703 = vand.u32 %v218, 4294901760
        %v704 = vsub.f32 %v218, %v703
        %v705 = vand.u32 %v704, 4294901760
        %v706 = vsub.f32 %v704, %v705
        %v707 = vand.u32 %v706, 4294901760
        %708 = vmatpush.xpose.msra.mxu0 %v707
        %v709 = vand.u32 %v217, 4294901760
        %v710 = vsub.f32 %v217, %v709
        %v711 = vand.u32 %v710, 4294901760
        %v712 = vsub.f32 %v710, %v711
        %v713 = vand.u32 %v712, 4294901760
        %714 = vmatpush.xpose.msra.mxu0 %v713
        %v715 = vand.u32 %v216, 4294901760
        %v716 = vsub.f32 %v216, %v715
        %v717 = vand.u32 %v716, 4294901760
        %v718 = vsub.f32 %v716, %v717
        %v719 = vand.u32 %v718, 4294901760
        %720 = vmatpush.xpose.msra.mxu0 %v719
        %v721 = vand.u32 %v215, 4294901760
        %v722 = vsub.f32 %v215, %v721
        %v723 = vand.u32 %v722, 4294901760
        %v724 = vsub.f32 %v722, %v723
        %v725 = vand.u32 %v724, 4294901760
        %726 = vmatpush.xpose.msra.mxu0 %v725
        %v727 = vand.u32 %v214, 4294901760
        %v728 = vsub.f32 %v214, %v727
        %v729 = vand.u32 %v728, 4294901760
        %v730 = vsub.f32 %v728, %v729
        %v731 = vand.u32 %v730, 4294901760
        %732 = vmatpush.xpose.msra.mxu0 %v731
        %v733 = vand.u32 %v213, 4294901760
        %v734 = vsub.f32 %v213, %v733
        %v735 = vand.u32 %v734, 4294901760
        %v736 = vsub.f32 %v734, %v735
        %v737 = vand.u32 %v736, 4294901760
        %738 = vmatpush.xpose.msra.mxu0 %v737
        %v739 = vand.u32 %v212, 4294901760
        %v740 = vsub.f32 %v212, %v739
        %v741 = vand.u32 %v740, 4294901760
        %v742 = vsub.f32 %v740, %v741
        %v743 = vand.u32 %v742, 4294901760
        %744 = vmatpush.xpose.msra.mxu0 %v743
        %v745 = vand.u32 %v195, 4294901760
        %746 = vmatmul.f32.gmra.mxu0 %v745
        %v747 = vpop.f32.mrf.mxu0
        %v748 = vadd.f32 %v647, %v747
        %749 = vdwg.mxu0
        %v750 = vand.u32 %v227, 4294901760
        %v751 = vsub.f32 %v227, %v750
        %752 = vmatpush.xpose.msra.mxu0 %v751
        %v753 = vand.u32 %v226, 4294901760
        %v754 = vsub.f32 %v226, %v753
        %755 = vmatpush.xpose.msra.mxu0 %v754
        %v756 = vand.u32 %v225, 4294901760
        %v757 = vsub.f32 %v225, %v756
        %758 = vmatpush.xpose.msra.mxu0 %v757
        %v759 = vand.u32 %v224, 4294901760
        %v760 = vsub.f32 %v224, %v759
        %761 = vmatpush.xpose.msra.mxu0 %v760
        %v762 = vand.u32 %v223, 4294901760
        %v763 = vsub.f32 %v223, %v762
        %764 = vmatpush.xpose.msra.mxu0 %v763
        %v765 = vand.u32 %v222, 4294901760
        %v766 = vsub.f32 %v222, %v765
        %767 = vmatpush.xpose.msra.mxu0 %v766
        %v768 = vand.u32 %v221, 4294901760
        %v769 = vsub.f32 %v221, %v768
        %770 = vmatpush.xpose.msra.mxu0 %v769
        %v771 = vand.u32 %v220, 4294901760
        %v772 = vsub.f32 %v220, %v771
        %773 = vmatpush.xpose.msra.mxu0 %v772
        %v774 = vand.u32 %v219, 4294901760
        %v775 = vsub.f32 %v219, %v774
        %776 = vmatpush.xpose.msra.mxu0 %v775
        %v777 = vand.u32 %v218, 4294901760
        %v778 = vsub.f32 %v218, %v777
        %779 = vmatpush.xpose.msra.mxu0 %v778
        %v780 = vand.u32 %v217, 4294901760
        %v781 = vsub.f32 %v217, %v780
        %782 = vmatpush.xpose.msra.mxu0 %v781
        %v783 = vand.u32 %v216, 4294901760
        %v784 = vsub.f32 %v216, %v783
        %785 = vmatpush.xpose.msra.mxu0 %v784
        %v786 = vand.u32 %v215, 4294901760
        %v787 = vsub.f32 %v215, %v786
        %788 = vmatpush.xpose.msra.mxu0 %v787
        %v789 = vand.u32 %v214, 4294901760
        %v790 = vsub.f32 %v214, %v789
        %791 = vmatpush.xpose.msra.mxu0 %v790
        %v792 = vand.u32 %v213, 4294901760
        %v793 = vsub.f32 %v213, %v792
        %794 = vmatpush.xpose.msra.mxu0 %v793
        %v795 = vand.u32 %v212, 4294901760
        %v796 = vsub.f32 %v212, %v795
        %797 = vmatpush.xpose.msra.mxu0 %v796
        %v798 = vand.u32 %v195, 4294901760
        %v799 = vsub.f32 %v195, %v798
        %800 = vmatmul.f32.gmra.mxu0 %v799
        %v801 = vpop.f32.mrf.mxu0
        %v802 = vadd.f32 %v748, %v801
        %803 = vdwg.mxu0
        %v804 = vand.u32 %v227, 4294901760
        %805 = vmatpush.xpose.msra.mxu0 %v804
        %v806 = vand.u32 %v226, 4294901760
        %807 = vmatpush.xpose.msra.mxu0 %v806
        %v808 = vand.u32 %v225, 4294901760
        %809 = vmatpush.xpose.msra.mxu0 %v808
        %v810 = vand.u32 %v224, 4294901760
        %811 = vmatpush.xpose.msra.mxu0 %v810
        %v812 = vand.u32 %v223, 4294901760
        %813 = vmatpush.xpose.msra.mxu0 %v812
        %v814 = vand.u32 %v222, 4294901760
        %815 = vmatpush.xpose.msra.mxu0 %v814
        %v816 = vand.u32 %v221, 4294901760
        %817 = vmatpush.xpose.msra.mxu0 %v816
        %v818 = vand.u32 %v220, 4294901760
        %819 = vmatpush.xpose.msra.mxu0 %v818
        %v820 = vand.u32 %v219, 4294901760
        %821 = vmatpush.xpose.msra.mxu0 %v820
        %v822 = vand.u32 %v218, 4294901760
        %823 = vmatpush.xpose.msra.mxu0 %v822
        %v824 = vand.u32 %v217, 4294901760
        %825 = vmatpush.xpose.msra.mxu0 %v824
        %v826 = vand.u32 %v216, 4294901760
        %827 = vmatpush.xpose.msra.mxu0 %v826
        %v828 = vand.u32 %v215, 4294901760
        %829 = vmatpush.xpose.msra.mxu0 %v828
        %v830 = vand.u32 %v214, 4294901760
        %831 = vmatpush.xpose.msra.mxu0 %v830
        %v832 = vand.u32 %v213, 4294901760
        %833 = vmatpush.xpose.msra.mxu0 %v832
        %v834 = vand.u32 %v212, 4294901760
        %835 = vmatpush.xpose.msra.mxu0 %v834
        %v836 = vand.u32 %v195, 4294901760
        %v837 = vsub.f32 %v195, %v836
        %v838 = vand.u32 %v837, 4294901760
        %839 = vmatmul.f32.gmra.mxu0 %v838
        %v840 = vpop.f32.mrf.mxu0
        %v841 = vadd.f32 %v802, %v840
        %842 = vdwg.mxu0
        %v843 = vand.u32 %v227, 4294901760
        %v844 = vsub.f32 %v227, %v843
        %v845 = vand.u32 %v844, 4294901760
        %846 = vmatpush.xpose.msra.mxu0 %v845
        %v847 = vand.u32 %v226, 4294901760
        %v848 = vsub.f32 %v226, %v847
        %v849 = vand.u32 %v848, 4294901760
        %850 = vmatpush.xpose.msra.mxu0 %v849
        %v851 = vand.u32 %v225, 4294901760
        %v852 = vsub.f32 %v225, %v851
        %v853 = vand.u32 %v852, 4294901760
        %854 = vmatpush.xpose.msra.mxu0 %v853
        %v855 = vand.u32 %v224, 4294901760
        %v856 = vsub.f32 %v224, %v855
        %v857 = vand.u32 %v856, 4294901760
        %858 = vmatpush.xpose.msra.mxu0 %v857
        %v859 = vand.u32 %v223, 4294901760
        %v860 = vsub.f32 %v223, %v859
        %v861 = vand.u32 %v860, 4294901760
        %862 = vmatpush.xpose.msra.mxu0 %v861
        %v863 = vand.u32 %v222, 4294901760
        %v864 = vsub.f32 %v222, %v863
        %v865 = vand.u32 %v864, 4294901760
        %866 = vmatpush.xpose.msra.mxu0 %v865
        %v867 = vand.u32 %v221, 4294901760
        %v868 = vsub.f32 %v221, %v867
        %v869 = vand.u32 %v868, 4294901760
        %870 = vmatpush.xpose.msra.mxu0 %v869
        %v871 = vand.u32 %v220, 4294901760
        %v872 = vsub.f32 %v220, %v871
        %v873 = vand.u32 %v872, 4294901760
        %874 = vmatpush.xpose.msra.mxu0 %v873
        %v875 = vand.u32 %v219, 4294901760
        %v876 = vsub.f32 %v219, %v875
        %v877 = vand.u32 %v876, 4294901760
        %878 = vmatpush.xpose.msra.mxu0 %v877
        %v879 = vand.u32 %v218, 4294901760
        %v880 = vsub.f32 %v218, %v879
        %v881 = vand.u32 %v880, 4294901760
        %882 = vmatpush.xpose.msra.mxu0 %v881
        %v883 = vand.u32 %v217, 4294901760
        %v884 = vsub.f32 %v217, %v883
        %v885 = vand.u32 %v884, 4294901760
        %886 = vmatpush.xpose.msra.mxu0 %v885
        %v887 = vand.u32 %v216, 4294901760
        %v888 = vsub.f32 %v216, %v887
        %v889 = vand.u32 %v888, 4294901760
        %890 = vmatpush.xpose.msra.mxu0 %v889
        %v891 = vand.u32 %v215, 4294901760
        %v892 = vsub.f32 %v215, %v891
        %v893 = vand.u32 %v892, 4294901760
        %894 = vmatpush.xpose.msra.mxu0 %v893
        %v895 = vand.u32 %v214, 4294901760
        %v896 = vsub.f32 %v214, %v895
        %v897 = vand.u32 %v896, 4294901760
        %898 = vmatpush.xpose.msra.mxu0 %v897
        %v899 = vand.u32 %v213, 4294901760
        %v900 = vsub.f32 %v213, %v899
        %v901 = vand.u32 %v900, 4294901760
        %902 = vmatpush.xpose.msra.mxu0 %v901
        %v903 = vand.u32 %v212, 4294901760
        %v904 = vsub.f32 %v212, %v903
        %v905 = vand.u32 %v904, 4294901760
        %906 = vmatpush.xpose.msra.mxu0 %v905
        %v907 = vand.u32 %v195, 4294901760
        %908 = vmatmul.f32.gmra.mxu0 %v907
        %v909 = vpop.f32.mrf.mxu0
        %v910 = vadd.f32 %v841, %v909
        %911 = vdwg.mxu0
        %v912 = vand.u32 %v227, 4294901760
        %913 = vmatpush.xpose.msra.mxu0 %v912
        %v914 = vand.u32 %v226, 4294901760
        %915 = vmatpush.xpose.msra.mxu0 %v914
        %v916 = vand.u32 %v225, 4294901760
        %917 = vmatpush.xpose.msra.mxu0 %v916
        %v918 = vand.u32 %v224, 4294901760
        %919 = vmatpush.xpose.msra.mxu0 %v918
        %v920 = vand.u32 %v223, 4294901760
        %921 = vmatpush.xpose.msra.mxu0 %v920
        %v922 = vand.u32 %v222, 4294901760
        %923 = vmatpush.xpose.msra.mxu0 %v922
        %v924 = vand.u32 %v221, 4294901760
        %925 = vmatpush.xpose.msra.mxu0 %v924
        %v926 = vand.u32 %v220, 4294901760
        %927 = vmatpush.xpose.msra.mxu0 %v926
        %v928 = vand.u32 %v219, 4294901760
        %929 = vmatpush.xpose.msra.mxu0 %v928
        %v930 = vand.u32 %v218, 4294901760
        %931 = vmatpush.xpose.msra.mxu0 %v930
        %v932 = vand.u32 %v217, 4294901760
        %933 = vmatpush.xpose.msra.mxu0 %v932
        %v934 = vand.u32 %v216, 4294901760
        %935 = vmatpush.xpose.msra.mxu0 %v934
        %v936 = vand.u32 %v215, 4294901760
        %937 = vmatpush.xpose.msra.mxu0 %v936
        %v938 = vand.u32 %v214, 4294901760
        %939 = vmatpush.xpose.msra.mxu0 %v938
        %v940 = vand.u32 %v213, 4294901760
        %941 = vmatpush.xpose.msra.mxu0 %v940
        %v942 = vand.u32 %v212, 4294901760
        %943 = vmatpush.xpose.msra.mxu0 %v942
        %v944 = vand.u32 %v195, 4294901760
        %945 = vmatmul.f32.gmra.mxu0 %v944
        %v946 = vpop.f32.mrf.mxu0
        %v947 = vadd.f32 %v910, %v946
        %948 = vdwg.mxu0
        %v949 = vand.u32 %v243, 4294901760
        %950 = vmatpush.xpose.msra.mxu0 %v949
        %v951 = vand.u32 %v242, 4294901760
        %952 = vmatpush.xpose.msra.mxu0 %v951
        %v953 = vand.u32 %v241, 4294901760
        %954 = vmatpush.xpose.msra.mxu0 %v953
        %v955 = vand.u32 %v240, 4294901760
        %956 = vmatpush.xpose.msra.mxu0 %v955
        %v957 = vand.u32 %v239, 4294901760
        %958 = vmatpush.xpose.msra.mxu0 %v957
        %v959 = vand.u32 %v238, 4294901760
        %960 = vmatpush.xpose.msra.mxu0 %v959
        %v961 = vand.u32 %v237, 4294901760
        %962 = vmatpush.xpose.msra.mxu0 %v961
        %v963 = vand.u32 %v236, 4294901760
        %964 = vmatpush.xpose.msra.mxu0 %v963
        %v965 = vand.u32 %v235, 4294901760
        %966 = vmatpush.xpose.msra.mxu0 %v965
        %v967 = vand.u32 %v234, 4294901760
        %968 = vmatpush.xpose.msra.mxu0 %v967
        %v969 = vand.u32 %v233, 4294901760
        %970 = vmatpush.xpose.msra.mxu0 %v969
        %v971 = vand.u32 %v232, 4294901760
        %972 = vmatpush.xpose.msra.mxu0 %v971
        %v973 = vand.u32 %v231, 4294901760
        %974 = vmatpush.xpose.msra.mxu0 %v973
        %v975 = vand.u32 %v230, 4294901760
        %976 = vmatpush.xpose.msra.mxu0 %v975
        %v977 = vand.u32 %v229, 4294901760
        %978 = vmatpush.xpose.msra.mxu0 %v977
        %v979 = vand.u32 %v228, 4294901760
        %980 = vmatpush.xpose.msra.mxu0 %v979
        %v981 = vand.u32 %v195, 4294901760
        %v982 = vsub.f32 %v195, %v981
        %v983 = vand.u32 %v982, 4294901760
        %v984 = vsub.f32 %v982, %v983
        %v985 = vand.u32 %v984, 4294901760
        %986 = vmatmul.f32.gmra.mxu0 %v985
        %v987 = vpop.f32.mrf.mxu0
        %v988 = vadd.f32 %v266, %v987
        %989 = vdwg.mxu0
        %v990 = vand.u32 %v243, 4294901760
        %v991 = vsub.f32 %v243, %v990
        %v992 = vand.u32 %v991, 4294901760
        %v993 = vsub.f32 %v991, %v992
        %v994 = vand.u32 %v993, 4294901760
        %995 = vmatpush.xpose.msra.mxu0 %v994
        %v996 = vand.u32 %v242, 4294901760
        %v997 = vsub.f32 %v242, %v996
        %v998 = vand.u32 %v997, 4294901760
        %v999 = vsub.f32 %v997, %v998
        %v1000 = vand.u32 %v999, 4294901760
        %1001 = vmatpush.xpose.msra.mxu0 %v1000
        %v1002 = vand.u32 %v241, 4294901760
        %v1003 = vsub.f32 %v241, %v1002
        %v1004 = vand.u32 %v1003, 4294901760
        %v1005 = vsub.f32 %v1003, %v1004
        %v1006 = vand.u32 %v1005, 4294901760
        %1007 = vmatpush.xpose.msra.mxu0 %v1006
        %v1008 = vand.u32 %v240, 4294901760
        %v1009 = vsub.f32 %v240, %v1008
        %v1010 = vand.u32 %v1009, 4294901760
        %v1011 = vsub.f32 %v1009, %v1010
        %v1012 = vand.u32 %v1011, 4294901760
        %1013 = vmatpush.xpose.msra.mxu0 %v1012
        %v1014 = vand.u32 %v239, 4294901760
        %v1015 = vsub.f32 %v239, %v1014
        %v1016 = vand.u32 %v1015, 4294901760
        %v1017 = vsub.f32 %v1015, %v1016
        %v1018 = vand.u32 %v1017, 4294901760
        %1019 = vmatpush.xpose.msra.mxu0 %v1018
        %v1020 = vand.u32 %v238, 4294901760
        %v1021 = vsub.f32 %v238, %v1020
        %v1022 = vand.u32 %v1021, 4294901760
        %v1023 = vsub.f32 %v1021, %v1022
        %v1024 = vand.u32 %v1023, 4294901760
        %1025 = vmatpush.xpose.msra.mxu0 %v1024
        %v1026 = vand.u32 %v237, 4294901760
        %v1027 = vsub.f32 %v237, %v1026
        %v1028 = vand.u32 %v1027, 4294901760
        %v1029 = vsub.f32 %v1027, %v1028
        %v1030 = vand.u32 %v1029, 4294901760
        %1031 = vmatpush.xpose.msra.mxu0 %v1030
        %v1032 = vand.u32 %v236, 4294901760
        %v1033 = vsub.f32 %v236, %v1032
        %v1034 = vand.u32 %v1033, 4294901760
        %v1035 = vsub.f32 %v1033, %v1034
        %v1036 = vand.u32 %v1035, 4294901760
        %1037 = vmatpush.xpose.msra.mxu0 %v1036
        %v1038 = vand.u32 %v235, 4294901760
        %v1039 = vsub.f32 %v235, %v1038
        %v1040 = vand.u32 %v1039, 4294901760
        %v1041 = vsub.f32 %v1039, %v1040
        %v1042 = vand.u32 %v1041, 4294901760
        %1043 = vmatpush.xpose.msra.mxu0 %v1042
        %v1044 = vand.u32 %v234, 4294901760
        %v1045 = vsub.f32 %v234, %v1044
        %v1046 = vand.u32 %v1045, 4294901760
        %v1047 = vsub.f32 %v1045, %v1046
        %v1048 = vand.u32 %v1047, 4294901760
        %1049 = vmatpush.xpose.msra.mxu0 %v1048
        %v1050 = vand.u32 %v233, 4294901760
        %v1051 = vsub.f32 %v233, %v1050
        %v1052 = vand.u32 %v1051, 4294901760
        %v1053 = vsub.f32 %v1051, %v1052
        %v1054 = vand.u32 %v1053, 4294901760
        %1055 = vmatpush.xpose.msra.mxu0 %v1054
        %v1056 = vand.u32 %v232, 4294901760
        %v1057 = vsub.f32 %v232, %v1056
        %v1058 = vand.u32 %v1057, 4294901760
        %v1059 = vsub.f32 %v1057, %v1058
        %v1060 = vand.u32 %v1059, 4294901760
        %1061 = vmatpush.xpose.msra.mxu0 %v1060
        %v1062 = vand.u32 %v231, 4294901760
        %v1063 = vsub.f32 %v231, %v1062
        %v1064 = vand.u32 %v1063, 4294901760
        %v1065 = vsub.f32 %v1063, %v1064
        %v1066 = vand.u32 %v1065, 4294901760
        %1067 = vmatpush.xpose.msra.mxu0 %v1066
        %v1068 = vand.u32 %v230, 4294901760
        %v1069 = vsub.f32 %v230, %v1068
        %v1070 = vand.u32 %v1069, 4294901760
        %v1071 = vsub.f32 %v1069, %v1070
        %v1072 = vand.u32 %v1071, 4294901760
        %1073 = vmatpush.xpose.msra.mxu0 %v1072
        %v1074 = vand.u32 %v229, 4294901760
        %v1075 = vsub.f32 %v229, %v1074
        %v1076 = vand.u32 %v1075, 4294901760
        %v1077 = vsub.f32 %v1075, %v1076
        %v1078 = vand.u32 %v1077, 4294901760
        %1079 = vmatpush.xpose.msra.mxu0 %v1078
        %v1080 = vand.u32 %v228, 4294901760
        %v1081 = vsub.f32 %v228, %v1080
        %v1082 = vand.u32 %v1081, 4294901760
        %v1083 = vsub.f32 %v1081, %v1082
        %v1084 = vand.u32 %v1083, 4294901760
        %1085 = vmatpush.xpose.msra.mxu0 %v1084
        %v1086 = vand.u32 %v195, 4294901760
        %1087 = vmatmul.f32.gmra.mxu0 %v1086
        %v1088 = vpop.f32.mrf.mxu0
        %v1089 = vadd.f32 %v988, %v1088
        %1090 = vdwg.mxu0
        %v1091 = vand.u32 %v243, 4294901760
        %v1092 = vsub.f32 %v243, %v1091
        %1093 = vmatpush.xpose.msra.mxu0 %v1092
        %v1094 = vand.u32 %v242, 4294901760
        %v1095 = vsub.f32 %v242, %v1094
        %1096 = vmatpush.xpose.msra.mxu0 %v1095
        %v1097 = vand.u32 %v241, 4294901760
        %v1098 = vsub.f32 %v241, %v1097
        %1099 = vmatpush.xpose.msra.mxu0 %v1098
        %v1100 = vand.u32 %v240, 4294901760
        %v1101 = vsub.f32 %v240, %v1100
        %1102 = vmatpush.xpose.msra.mxu0 %v1101
        %v1103 = vand.u32 %v239, 4294901760
        %v1104 = vsub.f32 %v239, %v1103
        %1105 = vmatpush.xpose.msra.mxu0 %v1104
        %v1106 = vand.u32 %v238, 4294901760
        %v1107 = vsub.f32 %v238, %v1106
        %1108 = vmatpush.xpose.msra.mxu0 %v1107
        %v1109 = vand.u32 %v237, 4294901760
        %v1110 = vsub.f32 %v237, %v1109
        %1111 = vmatpush.xpose.msra.mxu0 %v1110
        %v1112 = vand.u32 %v236, 4294901760
        %v1113 = vsub.f32 %v236, %v1112
        %1114 = vmatpush.xpose.msra.mxu0 %v1113
        %v1115 = vand.u32 %v235, 4294901760
        %v1116 = vsub.f32 %v235, %v1115
        %1117 = vmatpush.xpose.msra.mxu0 %v1116
        %v1118 = vand.u32 %v234, 4294901760
        %v1119 = vsub.f32 %v234, %v1118
        %1120 = vmatpush.xpose.msra.mxu0 %v1119
        %v1121 = vand.u32 %v233, 4294901760
        %v1122 = vsub.f32 %v233, %v1121
        %1123 = vmatpush.xpose.msra.mxu0 %v1122
        %v1124 = vand.u32 %v232, 4294901760
        %v1125 = vsub.f32 %v232, %v1124
        %1126 = vmatpush.xpose.msra.mxu0 %v1125
        %v1127 = vand.u32 %v231, 4294901760
        %v1128 = vsub.f32 %v231, %v1127
        %1129 = vmatpush.xpose.msra.mxu0 %v1128
        %v1130 = vand.u32 %v230, 4294901760
        %v1131 = vsub.f32 %v230, %v1130
        %1132 = vmatpush.xpose.msra.mxu0 %v1131
        %v1133 = vand.u32 %v229, 4294901760
        %v1134 = vsub.f32 %v229, %v1133
        %1135 = vmatpush.xpose.msra.mxu0 %v1134
        %v1136 = vand.u32 %v228, 4294901760
        %v1137 = vsub.f32 %v228, %v1136
        %1138 = vmatpush.xpose.msra.mxu0 %v1137
        %v1139 = vand.u32 %v195, 4294901760
        %v1140 = vsub.f32 %v195, %v1139
        %1141 = vmatmul.f32.gmra.mxu0 %v1140
        %v1142 = vpop.f32.mrf.mxu0
        %v1143 = vadd.f32 %v1089, %v1142
        %1144 = vdwg.mxu0
        %v1145 = vand.u32 %v243, 4294901760
        %1146 = vmatpush.xpose.msra.mxu0 %v1145
        %v1147 = vand.u32 %v242, 4294901760
        %1148 = vmatpush.xpose.msra.mxu0 %v1147
        %v1149 = vand.u32 %v241, 4294901760
        %1150 = vmatpush.xpose.msra.mxu0 %v1149
        %v1151 = vand.u32 %v240, 4294901760
        %1152 = vmatpush.xpose.msra.mxu0 %v1151
        %v1153 = vand.u32 %v239, 4294901760
        %1154 = vmatpush.xpose.msra.mxu0 %v1153
        %v1155 = vand.u32 %v238, 4294901760
        %1156 = vmatpush.xpose.msra.mxu0 %v1155
        %v1157 = vand.u32 %v237, 4294901760
        %1158 = vmatpush.xpose.msra.mxu0 %v1157
        %v1159 = vand.u32 %v236, 4294901760
        %1160 = vmatpush.xpose.msra.mxu0 %v1159
        %v1161 = vand.u32 %v235, 4294901760
        %1162 = vmatpush.xpose.msra.mxu0 %v1161
        %v1163 = vand.u32 %v234, 4294901760
        %1164 = vmatpush.xpose.msra.mxu0 %v1163
        %v1165 = vand.u32 %v233, 4294901760
        %1166 = vmatpush.xpose.msra.mxu0 %v1165
        %v1167 = vand.u32 %v232, 4294901760
        %1168 = vmatpush.xpose.msra.mxu0 %v1167
        %v1169 = vand.u32 %v231, 4294901760
        %1170 = vmatpush.xpose.msra.mxu0 %v1169
        %v1171 = vand.u32 %v230, 4294901760
        %1172 = vmatpush.xpose.msra.mxu0 %v1171
        %v1173 = vand.u32 %v229, 4294901760
        %1174 = vmatpush.xpose.msra.mxu0 %v1173
        %v1175 = vand.u32 %v228, 4294901760
        %1176 = vmatpush.xpose.msra.mxu0 %v1175
        %v1177 = vand.u32 %v195, 4294901760
        %v1178 = vsub.f32 %v195, %v1177
        %v1179 = vand.u32 %v1178, 4294901760
        %1180 = vmatmul.f32.gmra.mxu0 %v1179
        %v1181 = vpop.f32.mrf.mxu0
        %v1182 = vadd.f32 %v1143, %v1181
        %1183 = vdwg.mxu0
        %v1184 = vand.u32 %v243, 4294901760
        %v1185 = vsub.f32 %v243, %v1184
        %v1186 = vand.u32 %v1185, 4294901760
        %1187 = vmatpush.xpose.msra.mxu0 %v1186
        %v1188 = vand.u32 %v242, 4294901760
        %v1189 = vsub.f32 %v242, %v1188
        %v1190 = vand.u32 %v1189, 4294901760
        %1191 = vmatpush.xpose.msra.mxu0 %v1190
        %v1192 = vand.u32 %v241, 4294901760
        %v1193 = vsub.f32 %v241, %v1192
        %v1194 = vand.u32 %v1193, 4294901760
        %1195 = vmatpush.xpose.msra.mxu0 %v1194
        %v1196 = vand.u32 %v240, 4294901760
        %v1197 = vsub.f32 %v240, %v1196
        %v1198 = vand.u32 %v1197, 4294901760
        %1199 = vmatpush.xpose.msra.mxu0 %v1198
        %v1200 = vand.u32 %v239, 4294901760
        %v1201 = vsub.f32 %v239, %v1200
        %v1202 = vand.u32 %v1201, 4294901760
        %1203 = vmatpush.xpose.msra.mxu0 %v1202
        %v1204 = vand.u32 %v238, 4294901760
        %v1205 = vsub.f32 %v238, %v1204
        %v1206 = vand.u32 %v1205, 4294901760
        %1207 = vmatpush.xpose.msra.mxu0 %v1206
        %v1208 = vand.u32 %v237, 4294901760
        %v1209 = vsub.f32 %v237, %v1208
        %v1210 = vand.u32 %v1209, 4294901760
        %1211 = vmatpush.xpose.msra.mxu0 %v1210
        %v1212 = vand.u32 %v236, 4294901760
        %v1213 = vsub.f32 %v236, %v1212
        %v1214 = vand.u32 %v1213, 4294901760
        %1215 = vmatpush.xpose.msra.mxu0 %v1214
        %v1216 = vand.u32 %v235, 4294901760
        %v1217 = vsub.f32 %v235, %v1216
        %v1218 = vand.u32 %v1217, 4294901760
        %1219 = vmatpush.xpose.msra.mxu0 %v1218
        %v1220 = vand.u32 %v234, 4294901760
        %v1221 = vsub.f32 %v234, %v1220
        %v1222 = vand.u32 %v1221, 4294901760
        %1223 = vmatpush.xpose.msra.mxu0 %v1222
        %v1224 = vand.u32 %v233, 4294901760
        %v1225 = vsub.f32 %v233, %v1224
        %v1226 = vand.u32 %v1225, 4294901760
        %1227 = vmatpush.xpose.msra.mxu0 %v1226
        %v1228 = vand.u32 %v232, 4294901760
        %v1229 = vsub.f32 %v232, %v1228
        %v1230 = vand.u32 %v1229, 4294901760
        %1231 = vmatpush.xpose.msra.mxu0 %v1230
        %v1232 = vand.u32 %v231, 4294901760
        %v1233 = vsub.f32 %v231, %v1232
        %v1234 = vand.u32 %v1233, 4294901760
        %1235 = vmatpush.xpose.msra.mxu0 %v1234
        %v1236 = vand.u32 %v230, 4294901760
        %v1237 = vsub.f32 %v230, %v1236
        %v1238 = vand.u32 %v1237, 4294901760
        %1239 = vmatpush.xpose.msra.mxu0 %v1238
        %v1240 = vand.u32 %v229, 4294901760
        %v1241 = vsub.f32 %v229, %v1240
        %v1242 = vand.u32 %v1241, 4294901760
        %1243 = vmatpush.xpose.msra.mxu0 %v1242
        %v1244 = vand.u32 %v228, 4294901760
        %v1245 = vsub.f32 %v228, %v1244
        %v1246 = vand.u32 %v1245, 4294901760
        %1247 = vmatpush.xpose.msra.mxu0 %v1246
        %v1248 = vand.u32 %v195, 4294901760
        %1249 = vmatmul.f32.gmra.mxu0 %v1248
        %v1250 = vpop.f32.mrf.mxu0
        %v1251 = vadd.f32 %v1182, %v1250
        %1252 = vdwg.mxu0
        %v1253 = vand.u32 %v243, 4294901760
        %1254 = vmatpush.xpose.msra.mxu0 %v1253
        %v1255 = vand.u32 %v242, 4294901760
        %1256 = vmatpush.xpose.msra.mxu0 %v1255
        %v1257 = vand.u32 %v241, 4294901760
        %1258 = vmatpush.xpose.msra.mxu0 %v1257
        %v1259 = vand.u32 %v240, 4294901760
        %1260 = vmatpush.xpose.msra.mxu0 %v1259
        %v1261 = vand.u32 %v239, 4294901760
        %1262 = vmatpush.xpose.msra.mxu0 %v1261
        %v1263 = vand.u32 %v238, 4294901760
        %1264 = vmatpush.xpose.msra.mxu0 %v1263
        %v1265 = vand.u32 %v237, 4294901760
        %1266 = vmatpush.xpose.msra.mxu0 %v1265
        %v1267 = vand.u32 %v236, 4294901760
        %1268 = vmatpush.xpose.msra.mxu0 %v1267
        %v1269 = vand.u32 %v235, 4294901760
        %1270 = vmatpush.xpose.msra.mxu0 %v1269
        %v1271 = vand.u32 %v234, 4294901760
        %1272 = vmatpush.xpose.msra.mxu0 %v1271
        %v1273 = vand.u32 %v233, 4294901760
        %1274 = vmatpush.xpose.msra.mxu0 %v1273
        %v1275 = vand.u32 %v232, 4294901760
        %1276 = vmatpush.xpose.msra.mxu0 %v1275
        %v1277 = vand.u32 %v231, 4294901760
        %1278 = vmatpush.xpose.msra.mxu0 %v1277
        %v1279 = vand.u32 %v230, 4294901760
        %1280 = vmatpush.xpose.msra.mxu0 %v1279
        %v1281 = vand.u32 %v229, 4294901760
        %1282 = vmatpush.xpose.msra.mxu0 %v1281
        %v1283 = vand.u32 %v228, 4294901760
        %1284 = vmatpush.xpose.msra.mxu0 %v1283
        %v1285 = vand.u32 %v195, 4294901760
        %1286 = vmatmul.f32.gmra.mxu0 %v1285
        %v1287 = vpop.f32.mrf.mxu0
        %v1288 = vadd.f32 %v1251, %v1287
        %1289 = vdwg.mxu0
        %v1290 = vand.u32 %v259, 4294901760
        %1291 = vmatpush.xpose.msra.mxu0 %v1290
        %v1292 = vand.u32 %v258, 4294901760
        %1293 = vmatpush.xpose.msra.mxu0 %v1292
        %v1294 = vand.u32 %v257, 4294901760
        %1295 = vmatpush.xpose.msra.mxu0 %v1294
        %v1296 = vand.u32 %v256, 4294901760
        %1297 = vmatpush.xpose.msra.mxu0 %v1296
        %v1298 = vand.u32 %v255, 4294901760
        %1299 = vmatpush.xpose.msra.mxu0 %v1298
        %v1300 = vand.u32 %v254, 4294901760
        %1301 = vmatpush.xpose.msra.mxu0 %v1300
        %v1302 = vand.u32 %v253, 4294901760
        %1303 = vmatpush.xpose.msra.mxu0 %v1302
        %v1304 = vand.u32 %v252, 4294901760
        %1305 = vmatpush.xpose.msra.mxu0 %v1304
        %v1306 = vand.u32 %v251, 4294901760
        %1307 = vmatpush.xpose.msra.mxu0 %v1306
        %v1308 = vand.u32 %v250, 4294901760
        %1309 = vmatpush.xpose.msra.mxu0 %v1308
        %v1310 = vand.u32 %v249, 4294901760
        %1311 = vmatpush.xpose.msra.mxu0 %v1310
        %v1312 = vand.u32 %v248, 4294901760
        %1313 = vmatpush.xpose.msra.mxu0 %v1312
        %v1314 = vand.u32 %v247, 4294901760
        %1315 = vmatpush.xpose.msra.mxu0 %v1314
        %v1316 = vand.u32 %v246, 4294901760
        %1317 = vmatpush.xpose.msra.mxu0 %v1316
        %v1318 = vand.u32 %v245, 4294901760
        %1319 = vmatpush.xpose.msra.mxu0 %v1318
        %v1320 = vand.u32 %v244, 4294901760
        %1321 = vmatpush.xpose.msra.mxu0 %v1320
        %v1322 = vand.u32 %v195, 4294901760
        %v1323 = vsub.f32 %v195, %v1322
        %v1324 = vand.u32 %v1323, 4294901760
        %v1325 = vsub.f32 %v1323, %v1324
        %v1326 = vand.u32 %v1325, 4294901760
        %1327 = vmatmul.f32.gmra.mxu0 %v1326
        %v1328 = vpop.f32.mrf.mxu0
        %v1329 = vadd.f32 %v266, %v1328
        %1330 = vdwg.mxu0
        %v1331 = vand.u32 %v259, 4294901760
        %v1332 = vsub.f32 %v259, %v1331
        %v1333 = vand.u32 %v1332, 4294901760
        %v1334 = vsub.f32 %v1332, %v1333
        %v1335 = vand.u32 %v1334, 4294901760
        %1336 = vmatpush.xpose.msra.mxu0 %v1335
        %v1337 = vand.u32 %v258, 4294901760
        %v1338 = vsub.f32 %v258, %v1337
        %v1339 = vand.u32 %v1338, 4294901760
        %v1340 = vsub.f32 %v1338, %v1339
        %v1341 = vand.u32 %v1340, 4294901760
        %1342 = vmatpush.xpose.msra.mxu0 %v1341
        %v1343 = vand.u32 %v257, 4294901760
        %v1344 = vsub.f32 %v257, %v1343
        %v1345 = vand.u32 %v1344, 4294901760
        %v1346 = vsub.f32 %v1344, %v1345
        %v1347 = vand.u32 %v1346, 4294901760
        %1348 = vmatpush.xpose.msra.mxu0 %v1347
        %v1349 = vand.u32 %v256, 4294901760
        %v1350 = vsub.f32 %v256, %v1349
        %v1351 = vand.u32 %v1350, 4294901760
        %v1352 = vsub.f32 %v1350, %v1351
        %v1353 = vand.u32 %v1352, 4294901760
        %1354 = vmatpush.xpose.msra.mxu0 %v1353
        %v1355 = vand.u32 %v255, 4294901760
        %v1356 = vsub.f32 %v255, %v1355
        %v1357 = vand.u32 %v1356, 4294901760
        %v1358 = vsub.f32 %v1356, %v1357
        %v1359 = vand.u32 %v1358, 4294901760
        %1360 = vmatpush.xpose.msra.mxu0 %v1359
        %v1361 = vand.u32 %v254, 4294901760
        %v1362 = vsub.f32 %v254, %v1361
        %v1363 = vand.u32 %v1362, 4294901760
        %v1364 = vsub.f32 %v1362, %v1363
        %v1365 = vand.u32 %v1364, 4294901760
        %1366 = vmatpush.xpose.msra.mxu0 %v1365
        %v1367 = vand.u32 %v253, 4294901760
        %v1368 = vsub.f32 %v253, %v1367
        %v1369 = vand.u32 %v1368, 4294901760
        %v1370 = vsub.f32 %v1368, %v1369
        %v1371 = vand.u32 %v1370, 4294901760
        %1372 = vmatpush.xpose.msra.mxu0 %v1371
        %v1373 = vand.u32 %v252, 4294901760
        %v1374 = vsub.f32 %v252, %v1373
        %v1375 = vand.u32 %v1374, 4294901760
        %v1376 = vsub.f32 %v1374, %v1375
        %v1377 = vand.u32 %v1376, 4294901760
        %1378 = vmatpush.xpose.msra.mxu0 %v1377
        %v1379 = vand.u32 %v251, 4294901760
        %v1380 = vsub.f32 %v251, %v1379
        %v1381 = vand.u32 %v1380, 4294901760
        %v1382 = vsub.f32 %v1380, %v1381
        %v1383 = vand.u32 %v1382, 4294901760
        %1384 = vmatpush.xpose.msra.mxu0 %v1383
        %v1385 = vand.u32 %v250, 4294901760
        %v1386 = vsub.f32 %v250, %v1385
        %v1387 = vand.u32 %v1386, 4294901760
        %v1388 = vsub.f32 %v1386, %v1387
        %v1389 = vand.u32 %v1388, 4294901760
        %1390 = vmatpush.xpose.msra.mxu0 %v1389
        %v1391 = vand.u32 %v249, 4294901760
        %v1392 = vsub.f32 %v249, %v1391
        %v1393 = vand.u32 %v1392, 4294901760
        %v1394 = vsub.f32 %v1392, %v1393
        %v1395 = vand.u32 %v1394, 4294901760
        %1396 = vmatpush.xpose.msra.mxu0 %v1395
        %v1397 = vand.u32 %v248, 4294901760
        %v1398 = vsub.f32 %v248, %v1397
        %v1399 = vand.u32 %v1398, 4294901760
        %v1400 = vsub.f32 %v1398, %v1399
        %v1401 = vand.u32 %v1400, 4294901760
        %1402 = vmatpush.xpose.msra.mxu0 %v1401
        %v1403 = vand.u32 %v247, 4294901760
        %v1404 = vsub.f32 %v247, %v1403
        %v1405 = vand.u32 %v1404, 4294901760
        %v1406 = vsub.f32 %v1404, %v1405
        %v1407 = vand.u32 %v1406, 4294901760
        %1408 = vmatpush.xpose.msra.mxu0 %v1407
        %v1409 = vand.u32 %v246, 4294901760
        %v1410 = vsub.f32 %v246, %v1409
        %v1411 = vand.u32 %v1410, 4294901760
        %v1412 = vsub.f32 %v1410, %v1411
        %v1413 = vand.u32 %v1412, 4294901760
        %1414 = vmatpush.xpose.msra.mxu0 %v1413
        %v1415 = vand.u32 %v245, 4294901760
        %v1416 = vsub.f32 %v245, %v1415
        %v1417 = vand.u32 %v1416, 4294901760
        %v1418 = vsub.f32 %v1416, %v1417
        %v1419 = vand.u32 %v1418, 4294901760
        %1420 = vmatpush.xpose.msra.mxu0 %v1419
        %v1421 = vand.u32 %v244, 4294901760
        %v1422 = vsub.f32 %v244, %v1421
        %v1423 = vand.u32 %v1422, 4294901760
        %v1424 = vsub.f32 %v1422, %v1423
        %v1425 = vand.u32 %v1424, 4294901760
        %1426 = vmatpush.xpose.msra.mxu0 %v1425
        %v1427 = vand.u32 %v195, 4294901760
        %1428 = vmatmul.f32.gmra.mxu0 %v1427
        %v1429 = vpop.f32.mrf.mxu0
        %v1430 = vadd.f32 %v1329, %v1429
        %1431 = vdwg.mxu0
        %v1432 = vand.u32 %v259, 4294901760
        %v1433 = vsub.f32 %v259, %v1432
        %1434 = vmatpush.xpose.msra.mxu0 %v1433
        %v1435 = vand.u32 %v258, 4294901760
        %v1436 = vsub.f32 %v258, %v1435
        %1437 = vmatpush.xpose.msra.mxu0 %v1436
        %v1438 = vand.u32 %v257, 4294901760
        %v1439 = vsub.f32 %v257, %v1438
        %1440 = vmatpush.xpose.msra.mxu0 %v1439
        %v1441 = vand.u32 %v256, 4294901760
        %v1442 = vsub.f32 %v256, %v1441
        %1443 = vmatpush.xpose.msra.mxu0 %v1442
        %v1444 = vand.u32 %v255, 4294901760
        %v1445 = vsub.f32 %v255, %v1444
        %1446 = vmatpush.xpose.msra.mxu0 %v1445
        %v1447 = vand.u32 %v254, 4294901760
        %v1448 = vsub.f32 %v254, %v1447
        %1449 = vmatpush.xpose.msra.mxu0 %v1448
        %v1450 = vand.u32 %v253, 4294901760
        %v1451 = vsub.f32 %v253, %v1450
        %1452 = vmatpush.xpose.msra.mxu0 %v1451
        %v1453 = vand.u32 %v252, 4294901760
        %v1454 = vsub.f32 %v252, %v1453
        %1455 = vmatpush.xpose.msra.mxu0 %v1454
        %v1456 = vand.u32 %v251, 4294901760
        %v1457 = vsub.f32 %v251, %v1456
        %1458 = vmatpush.xpose.msra.mxu0 %v1457
        %v1459 = vand.u32 %v250, 4294901760
        %v1460 = vsub.f32 %v250, %v1459
        %1461 = vmatpush.xpose.msra.mxu0 %v1460
        %v1462 = vand.u32 %v249, 4294901760
        %v1463 = vsub.f32 %v249, %v1462
        %1464 = vmatpush.xpose.msra.mxu0 %v1463
        %v1465 = vand.u32 %v248, 4294901760
        %v1466 = vsub.f32 %v248, %v1465
        %1467 = vmatpush.xpose.msra.mxu0 %v1466
        %v1468 = vand.u32 %v247, 4294901760
        %v1469 = vsub.f32 %v247, %v1468
        %1470 = vmatpush.xpose.msra.mxu0 %v1469
        %v1471 = vand.u32 %v246, 4294901760
        %v1472 = vsub.f32 %v246, %v1471
        %1473 = vmatpush.xpose.msra.mxu0 %v1472
        %v1474 = vand.u32 %v245, 4294901760
        %v1475 = vsub.f32 %v245, %v1474
        %1476 = vmatpush.xpose.msra.mxu0 %v1475
        %v1477 = vand.u32 %v244, 4294901760
        %v1478 = vsub.f32 %v244, %v1477
        %1479 = vmatpush.xpose.msra.mxu0 %v1478
        %v1480 = vand.u32 %v195, 4294901760
        %v1481 = vsub.f32 %v195, %v1480
        %1482 = vmatmul.f32.gmra.mxu0 %v1481
        %v1483 = vpop.f32.mrf.mxu0
        %v1484 = vadd.f32 %v1430, %v1483
        %1485 = vdwg.mxu0
        %v1486 = vand.u32 %v259, 4294901760
        %1487 = vmatpush.xpose.msra.mxu0 %v1486
        %v1488 = vand.u32 %v258, 4294901760
        %1489 = vmatpush.xpose.msra.mxu0 %v1488
        %v1490 = vand.u32 %v257, 4294901760
        %1491 = vmatpush.xpose.msra.mxu0 %v1490
        %v1492 = vand.u32 %v256, 4294901760
        %1493 = vmatpush.xpose.msra.mxu0 %v1492
        %v1494 = vand.u32 %v255, 4294901760
        %1495 = vmatpush.xpose.msra.mxu0 %v1494
        %v1496 = vand.u32 %v254, 4294901760
        %1497 = vmatpush.xpose.msra.mxu0 %v1496
        %v1498 = vand.u32 %v253, 4294901760
        %1499 = vmatpush.xpose.msra.mxu0 %v1498
        %v1500 = vand.u32 %v252, 4294901760
        %1501 = vmatpush.xpose.msra.mxu0 %v1500
        %v1502 = vand.u32 %v251, 4294901760
        %1503 = vmatpush.xpose.msra.mxu0 %v1502
        %v1504 = vand.u32 %v250, 4294901760
        %1505 = vmatpush.xpose.msra.mxu0 %v1504
        %v1506 = vand.u32 %v249, 4294901760
        %1507 = vmatpush.xpose.msra.mxu0 %v1506
        %v1508 = vand.u32 %v248, 4294901760
        %1509 = vmatpush.xpose.msra.mxu0 %v1508
        %v1510 = vand.u32 %v247, 4294901760
        %1511 = vmatpush.xpose.msra.mxu0 %v1510
        %v1512 = vand.u32 %v246, 4294901760
        %1513 = vmatpush.xpose.msra.mxu0 %v1512
        %v1514 = vand.u32 %v245, 4294901760
        %1515 = vmatpush.xpose.msra.mxu0 %v1514
        %v1516 = vand.u32 %v244, 4294901760
        %1517 = vmatpush.xpose.msra.mxu0 %v1516
        %v1518 = vand.u32 %v195, 4294901760
        %v1519 = vsub.f32 %v195, %v1518
        %v1520 = vand.u32 %v1519, 4294901760
        %1521 = vmatmul.f32.gmra.mxu0 %v1520
        %v1522 = vpop.f32.mrf.mxu0
        %v1523 = vadd.f32 %v1484, %v1522
        %1524 = vdwg.mxu0
        %v1525 = vand.u32 %v259, 4294901760
        %v1526 = vsub.f32 %v259, %v1525
        %v1527 = vand.u32 %v1526, 4294901760
        %1528 = vmatpush.xpose.msra.mxu0 %v1527
        %v1529 = vand.u32 %v258, 4294901760
        %v1530 = vsub.f32 %v258, %v1529
        %v1531 = vand.u32 %v1530, 4294901760
        %1532 = vmatpush.xpose.msra.mxu0 %v1531
        %v1533 = vand.u32 %v257, 4294901760
        %v1534 = vsub.f32 %v257, %v1533
        %v1535 = vand.u32 %v1534, 4294901760
        %1536 = vmatpush.xpose.msra.mxu0 %v1535
        %v1537 = vand.u32 %v256, 4294901760
        %v1538 = vsub.f32 %v256, %v1537
        %v1539 = vand.u32 %v1538, 4294901760
        %1540 = vmatpush.xpose.msra.mxu0 %v1539
        %v1541 = vand.u32 %v255, 4294901760
        %v1542 = vsub.f32 %v255, %v1541
        %v1543 = vand.u32 %v1542, 4294901760
        %1544 = vmatpush.xpose.msra.mxu0 %v1543
        %v1545 = vand.u32 %v254, 4294901760
        %v1546 = vsub.f32 %v254, %v1545
        %v1547 = vand.u32 %v1546, 4294901760
        %1548 = vmatpush.xpose.msra.mxu0 %v1547
        %v1549 = vand.u32 %v253, 4294901760
        %v1550 = vsub.f32 %v253, %v1549
        %v1551 = vand.u32 %v1550, 4294901760
        %1552 = vmatpush.xpose.msra.mxu0 %v1551
        %v1553 = vand.u32 %v252, 4294901760
        %v1554 = vsub.f32 %v252, %v1553
        %v1555 = vand.u32 %v1554, 4294901760
        %1556 = vmatpush.xpose.msra.mxu0 %v1555
        %v1557 = vand.u32 %v251, 4294901760
        %v1558 = vsub.f32 %v251, %v1557
        %v1559 = vand.u32 %v1558, 4294901760
        %1560 = vmatpush.xpose.msra.mxu0 %v1559
        %v1561 = vand.u32 %v250, 4294901760
        %v1562 = vsub.f32 %v250, %v1561
        %v1563 = vand.u32 %v1562, 4294901760
        %1564 = vmatpush.xpose.msra.mxu0 %v1563
        %v1565 = vand.u32 %v249, 4294901760
        %v1566 = vsub.f32 %v249, %v1565
        %v1567 = vand.u32 %v1566, 4294901760
        %1568 = vmatpush.xpose.msra.mxu0 %v1567
        %v1569 = vand.u32 %v248, 4294901760
        %v1570 = vsub.f32 %v248, %v1569
        %v1571 = vand.u32 %v1570, 4294901760
        %1572 = vmatpush.xpose.msra.mxu0 %v1571
        %v1573 = vand.u32 %v247, 4294901760
        %v1574 = vsub.f32 %v247, %v1573
        %v1575 = vand.u32 %v1574, 4294901760
        %1576 = vmatpush.xpose.msra.mxu0 %v1575
        %v1577 = vand.u32 %v246, 4294901760
        %v1578 = vsub.f32 %v246, %v1577
        %v1579 = vand.u32 %v1578, 4294901760
        %1580 = vmatpush.xpose.msra.mxu0 %v1579
        %v1581 = vand.u32 %v245, 4294901760
        %v1582 = vsub.f32 %v245, %v1581
        %v1583 = vand.u32 %v1582, 4294901760
        %1584 = vmatpush.xpose.msra.mxu0 %v1583
        %v1585 = vand.u32 %v244, 4294901760
        %v1586 = vsub.f32 %v244, %v1585
        %v1587 = vand.u32 %v1586, 4294901760
        %1588 = vmatpush.xpose.msra.mxu0 %v1587
        %v1589 = vand.u32 %v195, 4294901760
        %1590 = vmatmul.f32.gmra.mxu0 %v1589
        %v1591 = vpop.f32.mrf.mxu0
        %v1592 = vadd.f32 %v1523, %v1591
        %1593 = vdwg.mxu0
        %v1594 = vand.u32 %v259, 4294901760
        %1595 = vmatpush.xpose.msra.mxu0 %v1594
        %v1596 = vand.u32 %v258, 4294901760
        %1597 = vmatpush.xpose.msra.mxu0 %v1596
        %v1598 = vand.u32 %v257, 4294901760
        %1599 = vmatpush.xpose.msra.mxu0 %v1598
        %v1600 = vand.u32 %v256, 4294901760
        %1601 = vmatpush.xpose.msra.mxu0 %v1600
        %v1602 = vand.u32 %v255, 4294901760
        %1603 = vmatpush.xpose.msra.mxu0 %v1602
        %v1604 = vand.u32 %v254, 4294901760
        %1605 = vmatpush.xpose.msra.mxu0 %v1604
        %v1606 = vand.u32 %v253, 4294901760
        %1607 = vmatpush.xpose.msra.mxu0 %v1606
        %v1608 = vand.u32 %v252, 4294901760
        %1609 = vmatpush.xpose.msra.mxu0 %v1608
        %v1610 = vand.u32 %v251, 4294901760
        %1611 = vmatpush.xpose.msra.mxu0 %v1610
        %v1612 = vand.u32 %v250, 4294901760
        %1613 = vmatpush.xpose.msra.mxu0 %v1612
        %v1614 = vand.u32 %v249, 4294901760
        %1615 = vmatpush.xpose.msra.mxu0 %v1614
        %v1616 = vand.u32 %v248, 4294901760
        %1617 = vmatpush.xpose.msra.mxu0 %v1616
        %v1618 = vand.u32 %v247, 4294901760
        %1619 = vmatpush.xpose.msra.mxu0 %v1618
        %v1620 = vand.u32 %v246, 4294901760
        %1621 = vmatpush.xpose.msra.mxu0 %v1620
        %v1622 = vand.u32 %v245, 4294901760
        %1623 = vmatpush.xpose.msra.mxu0 %v1622
        %v1624 = vand.u32 %v244, 4294901760
        %1625 = vmatpush.xpose.msra.mxu0 %v1624
        %v1626 = vand.u32 %v195, 4294901760
        %1627 = vmatmul.f32.gmra.mxu0 %v1626
        %v1628 = vpop.f32.mrf.mxu0
        %v1629 = vadd.f32 %v1592, %v1628
        %1630 = vdwg.mxu0
        %v1635 = vrot.slane %v947, 7
        %v1636 = vrot.slane %v1288, 6
        %v1637 = vrot.slane %v1629, 5
        %vm1638 = vcmask 1040384
        %v1639 = vsel %vm1638, %v606, %v1635
        %vm1640 = vcmask 1042434
        %v1641 = vsel %vm1640, %v1636, %v1637
        %vm1642 = vcmask 1041408
        %v1643 = vsel %vm1642, %v1639, %v1641
        %v1645 = vlaneseq
        %vm1646 = vcmp.ge.s32.totalorder %v1645, 0
        %vm1647 = vcmp.lt.s32.totalorder %v1645, 512
        %vm1648 = vmand %vm1646, %vm1647
        %1649 = vst.msk [vmem:[%s192] sm:$0xf] %vm1648, %v1643
        %s1650 = sand.u32 %s98, 1
        %s1651 = scalar_lea.sflag [#allocation5], %s1650
        %s1652 = sand.u32 %s98, 1
        %s1653 = smul.addr %s1652, 4
        %s1654 = scalar_lea.vmem [#allocation6], %s1653
        // Predicated region
        $region37: #{time_log_model.1} parent=31 // pred_check
          %p1655 = pneg %p108
        $region38: #{time_log_model.1} parent=31 // pred_check_branch
          %1657 = sbr.rel (%p1655) target = $region40
        $region39: #{time_log_model.1} parent=31 // pred_region
          %s1658 = smul.u32 4, %s22
          %1660 = vsyncadd %s1651, 0
          %s1661 = scalar_lea.hbm %s3, %s1658
          %s1663 = sshll.u32 %s1654, 4
          %s1664 = int_to_ptr.vmem [resolvable:$true] %s1663
          %s1665 = sshll.u32 %s1661, 4
          %s1666 = int_to_ptr.hbm [resolvable:$true] %s1665
          %1668 = dma.vmem_to_hbm [thread:$0]  %s1664, 64, %s1666, %s1651
        $region40: #{time_log_model.1} parent=31 // pred_fallthru
          _
      $region32: #{time_log_model.1} parent=5 // pred_fallthru
        _
      %p1669 = scmp.le.s32.totalorder 2, %s17
      // Predicated region
      $region41: #{time_log_model.1} parent=5 // pred_check
        %p1670 = pneg %p1669
      $region42: #{time_log_model.1} parent=5 // pred_check_branch
        %1672 = sbr.rel (%p1670) target = $region44
      $region43: #{time_log_model.1} parent=5 // pred_region
        %s1673 = ssub.s32 %s17, 2
        // Predicated region
        $region45: #{time_log_model.1} parent=43 // pred_check
          %p1674 = pneg %p114
        $region46: #{time_log_model.1} parent=43 // pred_check_branch
          %1676 = sbr.rel (%p1674) target = $region48
        $region47: #{time_log_model.1} parent=43 // pred_region
          %s1677 = sand.u32 %s99, 1
          %s1678 = scalar_lea.sflag [#allocation5], %s1677
          %s1679 = sand.u32 %s99, 1
          %s1680 = smul.addr %s1679, 4
          %s1681 = scalar_lea.vmem [#allocation6], %s1680
          %1683 = dma.done %s1678, 64
        $region48: #{time_log_model.1} parent=43 // pred_fallthru
          _
      $region44: #{time_log_model.1} parent=5 // pred_fallthru
        _
    $region6: #{time_log_model.1} parent=1 // loop_footer
      %s21 = sadd.s32 1, %s17
    $region7: #{time_log_model.1} parent=1 // loop_footer_branch
      %16 = sbr.rel target = $region3
    $region8: #{time_log_model.1} parent=1 // loop_exit
      _
    %1684 = vsyncpa [#allocation4], 1
    %s1685 = scalar_lea.sflag [#allocation4], 1
    %1686 = vsyncpa %s1685, 1
    %1687 = vsyncpa [#allocation5], 1
    %s1688 = scalar_lea.sflag [#allocation5], 1
    %1689 = vsyncpa %s1688, 1

</llo_original>
